<compile_context>
chip_gen: v6e
topology: v6e:2x2x1
jax: 0.10.0
libtpu: 0.0.40
codegen_flags: <defaults>
</compile_context>

<pallas_src>
import math

import jax
import jax.numpy as jnp
from jax.experimental import pallas as pl
from jax.experimental.pallas import tpu as pltpu


# ----------------------------------------------------------------------------
# tiling / VMEM policy helpers
# ----------------------------------------------------------------------------
def _vmem_limit_bytes():
    """Generation-aware scoped-VMEM limit (~80% of physical, capped at 112 MiB)."""
    try:
        cap = int(pltpu.get_tpu_info().vmem_capacity_bytes)
    except Exception:
        cap = 0
    if cap <= 0:
        return 64 * 1024 * 1024                      # safe default on v5e/v6e/v7x
    return max(32 * 1024 * 1024, min(112 * 1024 * 1024, int(0.8 * cap)))


def _pick_batch_tile(B, Fin, Fout, lane_target, batch_tile=None):
    """Smallest batch tile TB making TB*Fin and TB*Fout multiples of lane_target.

    The batch is zero-padded up to a multiple of TB; padded entries are masked
    out of the BN statistics and sliced off the final output."""
    if batch_tile is None:
        t = lane_target // math.gcd(Fin, lane_target)
        u = lane_target // math.gcd(Fout, lane_target)
        TB = t * u // math.gcd(t, u)                 # lcm(t, u)
    else:
        TB = int(batch_tile)
    Bp = ((B + TB - 1) // TB) * TB
    return TB, Bp


def _pick_row_tile(V, max_rows=512):
    """Row tile for the BN apply kernel (multiple of 8, or the full V)."""
    if V <= max_rows:
        return V
    start = max_rows - (max_rows % 8)
    for tv in range(start, 7, -8):
        if V % tv == 0:
            return tv
    return V


# ----------------------------------------------------------------------------
# preprocessing shared by the kernel wrapper and the mixed-precision mirror
# ----------------------------------------------------------------------------
def _prep(lap, x, weight, bias, TB, Bp):
    B, V, Fin = x.shape
    K, _, Fout = weight.shape
    lap2 = (2.0 * lap).astype(jnp.bfloat16)                   # fold the Chebyshev 2x into L
    if Bp != B:                                               # lane-density batch padding
        x = jnp.pad(x, ((0, Bp - B), (0, 0), (0, 0)))
    # lane-packed (V, Bp*Fin), pre-cast to bf16 (recurrence state stays f32 in-kernel)
    xT = jnp.transpose(x, (1, 0, 2)).reshape(V, Bp * Fin).astype(jnp.bfloat16)
    # halve the k>=1 weight slices to compensate the doubled basis z_k = 2*T_k(L)x
    kscale = jnp.concatenate([jnp.ones((1,), jnp.float32),
                              jnp.full((K - 1,), 0.5, jnp.float32)])
    w = weight.astype(jnp.float32) * kscale[:, None, None]    # (K, Fin, Fout)
    # block-diagonal fused weight: out_tile = sum_k basis_k @ Wbd[k]
    eye = jnp.eye(TB, dtype=jnp.float32)
    wbd = jnp.einsum("bc,kio->kbico", eye, w).reshape(K, TB * Fin, TB * Fout)
    wbd = wbd.astype(jnp.bfloat16)
    bias_t = jnp.tile(bias.astype(jnp.float32), TB).reshape(1, TB * Fout)
    return lap2, xT, wbd, bias_t


# ----------------------------------------------------------------------------
# Chebyshev convolution kernel (lane-packed batch, block-diagonal fused weight)
# ----------------------------------------------------------------------------
def _cheb_conv_lanepacked(lap, x, weight, bias, *, TB, Bp, single_buffer_lap=True):
    """Returns:
         y     : (V, Bp*Fout) f32   conv output + bias, lane-packed [b-major, fout-minor]
         stats : (nbt, 2, TB*Fout) f32  per-batch-tile [sum over V, sum of squares over V]
    """
    B, V, Fin = x.shape
    K, _, Fout = weight.shape
    nbt = Bp // TB
    if nbt > 1:
        # blocked lane dims must be 128-multiples (full-extent blocks are exempt)
        assert (TB * Fin) % 128 == 0 and (TB * Fout) % 128 == 0

    lap2, xT, wbd, bias_t = _prep(lap, x, weight, bias, TB, Bp)

    single_buffer = bool(single_buffer_lap) and K >= 2

    def kernel(lap_ref, x_ref, w_ref, b_ref, o_ref, stats_ref, *scratch):
        if single_buffer:
            lap_vmem, = scratch
            # one-time copy of the grid-invariant 2L into single-buffered VMEM
            @pl.when(pl.program_id(0) == 0)
            def _():
                pltpu.sync_copy(lap_ref, lap_vmem)
            twoL_ref = lap_vmem
        else:
            twoL_ref = lap_ref

        x0 = x_ref[...]                                               # (V, TB*Fin) bf16
        # fused recurrence + contraction: only zm2 / zm1 / acc stay live
        acc = jnp.dot(x0, w_ref[0], preferred_element_type=jnp.float32)
        if K >= 2:
            twoL = twoL_ref[...]                                      # (V, V) bf16 (= 2L)
            z = jnp.dot(twoL, x0, preferred_element_type=jnp.float32)          # 2*x_1
            acc = acc + jnp.dot(z.astype(jnp.bfloat16), w_ref[1],
                                preferred_element_type=jnp.float32)
            zm2, zm1 = 2.0 * x0.astype(jnp.float32), z
            for k in range(2, K):
                z = jnp.dot(twoL, zm1.astype(jnp.bfloat16),
                            preferred_element_type=jnp.float32) - zm2          # 2*x_k
                acc = acc + jnp.dot(z.astype(jnp.bfloat16), w_ref[k],
                                    preferred_element_type=jnp.float32)
                zm2, zm1 = zm1, z

        y = acc + b_ref[...]                                          # (V, TB*Fout) f32
        o_ref[...] = y
        # per-tile BN statistics, so the BN stage never re-reads y from HBM
        stats_ref[0, 0:1, :] = jnp.sum(y, axis=0, keepdims=True)
        stats_ref[0, 1:2, :] = jnp.sum(y * y, axis=0, keepdims=True)

    if single_buffer:
        # The pid==0-guarded copy is only valid if the batch-tile axis is NOT
        # sharded across TensorCores -> mark it 'arbitrary'.  On 2-TC parts
        # (v4/v5p/v7x) with nbt >= 2, prefer single_buffer_lap=False
        # ('parallel' + default double-buffered Laplacian) for megacore sharding.
        lap_spec = pl.BlockSpec(memory_space=pl.ANY)
        scratch_shapes = [pltpu.VMEM((V, V), jnp.bfloat16)]
        dim_sem = ("arbitrary",)
    else:
        lap_spec = pl.BlockSpec((V, V), lambda bt: (0, 0))
        scratch_shapes = []
        dim_sem = ("parallel",)

    flops = nbt * (2 * V * V * (TB * Fin) * max(K - 1, 0)
                   + 2 * V * (TB * Fin) * (TB * Fout) * K)
    bytes_accessed = (V * V * 2 + V * Bp * Fin * 2
                      + K * (TB * Fin) * (TB * Fout) * 2
                      + V * Bp * Fout * 4 + nbt * 2 * TB * Fout * 4)

    return pl.pallas_call(
        kernel,
        out_shape=(jax.ShapeDtypeStruct((V, Bp * Fout), jnp.float32),
                   jax.ShapeDtypeStruct((nbt, 2, TB * Fout), jnp.float32)),
        grid_spec=pltpu.PrefetchScalarGridSpec(
            num_scalar_prefetch=0,
            grid=(nbt,),
            in_specs=[
                lap_spec,                                                      # 2L
                pl.BlockSpec((V, TB * Fin), lambda bt: (0, bt)),               # lane-packed x (bf16)
                pl.BlockSpec((K, TB * Fin, TB * Fout), lambda bt: (0, 0, 0)),  # block-diag weights
                pl.BlockSpec((1, TB * Fout), lambda bt: (0, 0)),               # tiled bias
            ],
            out_specs=[
                pl.BlockSpec((V, TB * Fout), lambda bt: (0, bt)),              # lane-packed conv out
                pl.BlockSpec((1, 2, TB * Fout), lambda bt: (bt, 0, 0)),        # per-tile BN stats
            ],
            scratch_shapes=scratch_shapes,
        ),
        compiler_params=pltpu.CompilerParams(
            dimension_semantics=dim_sem,
            vmem_limit_bytes=_vmem_limit_bytes(),
        ),
        cost_estimate=pl.CostEstimate(flops=flops, transcendentals=0,
                                      bytes_accessed=bytes_accessed),
    )(lap2, xT, wbd, bias_t)


# ----------------------------------------------------------------------------
# BatchNorm (pre-folded scale/shift) + ReLU apply kernel, unpacks to (Bp,V,Fout)
# ----------------------------------------------------------------------------
def _bn_relu_apply(y_packed, scale, shift, *, V, Fout, TB, row_tile=None):
    Bp = y_packed.shape[1] // Fout
    nbt = Bp // TB
    TV = _pick_row_tile(V) if row_tile is None else row_tile
    nvt = V // TV

    scale_t = jnp.tile(scale.astype(jnp.float32), TB).reshape(1, TB * Fout)
    shift_t = jnp.tile(shift.astype(jnp.float32), TB).reshape(1, TB * Fout)

    def kernel(y_ref, sc_ref, sh_ref, o_ref):
        z = jnp.maximum(y_ref[...] * sc_ref[...] + sh_ref[...], 0.0)   # (TV, TB*Fout)
        for b in range(TB):            # static lane unpack -> (TB, TV, Fout) output block
            o_ref[b, :, :] = z[:, b * Fout:(b + 1) * Fout]

    return pl.pallas_call(
        kernel,
        out_shape=jax.ShapeDtypeStruct((Bp, V, Fout), jnp.float32),
        grid_spec=pltpu.PrefetchScalarGridSpec(
            num_scalar_prefetch=0,
            grid=(nbt, nvt),
            in_specs=[
                pl.BlockSpec((TV, TB * Fout), lambda bt, rv: (rv, bt)),
                pl.BlockSpec((1, TB * Fout), lambda bt, rv: (0, 0)),
                pl.BlockSpec((1, TB * Fout), lambda bt, rv: (0, 0)),
            ],
            out_specs=pl.BlockSpec((TB, TV, Fout), lambda bt, rv: (bt, rv, 0)),
        ),
        compiler_params=pltpu.CompilerParams(
            dimension_semantics=("parallel", "parallel"),
            vmem_limit_bytes=_vmem_limit_bytes(),
        ),
    )(y_packed, scale_t, shift_t)


# ----------------------------------------------------------------------------
# full module forward:  SphericalChebConv (+bias)  ->  BatchNorm1d  ->  ReLU
# ----------------------------------------------------------------------------
def spherical_cheb_bn(lap, x, weight, bias, gamma, beta, eps=1e-5, *,
                      lane_target=128, batch_tile=None, single_buffer_lap=True):
    """lane_target=128 is safe on all TPU generations; 256 fills the full MXU
    width on v6e/v7x at the cost of a larger minimum (padded) batch tile."""
    B, V, Fin = x.shape
    K, _, Fout = weight.shape
    TB, Bp = _pick_batch_tile(B, Fin, Fout, lane_target, batch_tile)

    y_packed, stats = _cheb_conv_lanepacked(lap, x, weight, bias, TB=TB, Bp=Bp,
                                            single_buffer_lap=single_buffer_lap)

    # Reduce the per-tile statistics (tiny: nbt*TB*Fout values) in plain JAX,
    # dropping zero-padded batch entries, and fold mean/var/gamma/beta into one
    # per-channel scale/shift for the apply kernel.
    s = stats[:, 0, :].reshape(Bp, Fout)[:B]
    s2 = stats[:, 1, :].reshape(Bp, Fout)[:B]
    n = float(B * V)
    mean = jnp.sum(s, axis=0) / n
    var = jnp.sum(s2, axis=0) / n - mean * mean           # biased variance (PyTorch BN)
    scale = gamma.astype(jnp.float32) * jax.lax.rsqrt(var + eps)
    shift = beta.astype(jnp.float32) - mean * scale

    out = _bn_relu_apply(y_packed, scale, shift, V=V, Fout=Fout, TB=TB)
    return out[:B]                                        # drop padded batch entries


# ----------------------------------------------------------------------------
# references
# ----------------------------------------------------------------------------
def _reference_mixed(lap, x, weight, bias, gamma, beta, eps=1e-5):
    """Pure-JAX mirror of the kernel math (same bf16 operand casts, doubled basis,
    block-diagonal weights and sum-of-squares statistics)."""
    B, V, Fin = x.shape
    K, _, Fout = weight.shape
    lap2, xT, wbd, bias_t = _prep(lap, x, weight, bias, B, B)
    x0 = xT
    acc = jnp.dot(x0, wbd[0], preferred_element_type=jnp.float32)
    if K >= 2:
        z = jnp.dot(lap2, x0, preferred_element_type=jnp.float32)
        acc = acc + jnp.dot(z.astype(jnp.bfloat16), wbd[1], preferred_element_type=jnp.float32)
        zm2, zm1 = 2.0 * x0.astype(jnp.float32), z
        for k in range(2, K):
            z = jnp.dot(lap2, zm1.astype(jnp.bfloat16), preferred_element_type=jnp.float32) - zm2
            acc = acc + jnp.dot(z.astype(jnp.bfloat16), wbd[k], preferred_element_type=jnp.float32)
            zm2, zm1 = zm1, z
    y = (acc + bias_t).reshape(V, B, Fout)
    mean = jnp.mean(y, axis=(0, 1))
    var = jnp.mean(jnp.square(y), axis=(0, 1)) - mean * mean
    scale = gamma * jax.lax.rsqrt(var + eps)
    shift = beta - mean * scale
    z = jnp.maximum(y * scale + shift, 0.0)
    return jnp.transpose(z, (1, 0, 2))                    # (B, V, Fout)


def _reference_f32(lap, x, weight, bias, gamma, beta, eps=1e-5):
    """Full-f32 module semantics (natural Chebyshev contraction)."""
    K = weight.shape[0]
    xs = [x]
    if K >= 2:
        x1 = jnp.einsum("uv,bvf->buf", lap, x)
        xs.append(x1)
        xm2, xm1 = x, x1
        for _ in range(2, K):
            x2 = 2.0 * jnp.einsum("uv,bvf->buf", lap, xm1) - xm2
            xs.append(x2)
            xm2, xm1 = xm1, x2
    y = jnp.einsum("kbvf,kfo->bvo", jnp.stack(xs, 0), weight) + bias
    mean = jnp.mean(y, axis=(0, 1))
    var = jnp.mean(jnp.square(y - mean), axis=(0, 1))
    yn = (y - mean) * gamma * jax.lax.rsqrt(var + eps) + beta
    return jnp.maximum(yn, 0.0)


if __name__ == "__main__":
    key = jax.random.PRNGKey(0)
    B, V, Fin, Fout, K = 2, 192, 4, 8, 3          # V = 192 (healpix nside=4 sampling)

    k_lap, k_x, k_w = jax.random.split(key, 3)

    # deterministic symmetric dense stand-in for the sparse sphere Laplacian
    a = jax.random.normal(k_lap, (V, V), dtype=jnp.float32) * 0.05
    lap = 0.5 * (a + a.T)

    x = jax.random.normal(k_x, (B, V, Fin), dtype=jnp.float32)

    # ChebConv.kaiming_initialization()
    std = math.sqrt(2.0 / (Fin * K))
    weight = jax.random.normal(k_w, (K, Fin, Fout), dtype=jnp.float32) * std
    bias = jnp.full((Fout,), 0.01, dtype=jnp.float32)

    # fresh BatchNorm1d affine parameters
    gamma = jnp.ones((Fout,), dtype=jnp.float32)
    beta = jnp.zeros((Fout,), dtype=jnp.float32)

    out = jax.block_until_ready(spherical_cheb_bn(lap, x, weight, bias, gamma, beta))
    assert out.shape == (B, V, Fout)

    # strict check against the mixed-precision (bf16-operand) mirror of the kernel math
    mirror = _reference_mixed(lap, x, weight, bias, gamma, beta)
    assert jnp.allclose(out, mirror, atol=1e-3, rtol=1e-3), "mismatch vs mixed-precision reference"

    # loose check against full-f32 module semantics (gap == bf16 MXU operand rounding)
    ref32 = _reference_f32(lap, x, weight, bias, gamma, beta)
    assert jnp.allclose(out, ref32, atol=5e-2, rtol=5e-2), "mismatch vs f32 reference"

    # K == 1 edge case (no Laplacian matmul at all)
    w1 = weight[:1]
    out1 = jax.block_until_ready(spherical_cheb_bn(lap, x, w1, bias, gamma, beta))
    mirror1 = _reference_mixed(lap, x, w1, bias, gamma, beta)
    assert jnp.allclose(out1, mirror1, atol=1e-3, rtol=1e-3), "K=1 mismatch vs reference"

    print("KERNEL_OK")
</pallas_src>

<mosaic_0001>
module attributes {stable_mosaic.version = 11 : i64} {
  func.func @kernel(%arg0: i32, %arg1: memref<192x192xbf16, #tpu.memory_space<any>>, %arg2: memref<192x128xbf16, #tpu.memory_space<vmem>>, %arg3: memref<3x128x256xbf16, #tpu.memory_space<vmem>>, %arg4: memref<1x256xf32, #tpu.memory_space<vmem>>, %arg5: memref<192x256xf32, #tpu.memory_space<vmem>>, %arg6: memref<1x2x256xf32, #tpu.memory_space<vmem>>, %arg7: memref<192x192xbf16, #tpu.memory_space<vmem>>) attributes {dimension_semantics = [#tpu.dimension_semantics<arbitrary>], iteration_bounds = array<i64: 1>, scalar_prefetch = 0 : i64, scratch_operands = 1 : i64, tpu.core_type = #tpu.core_type<tc>, window_params = [{}, {transform_indices = @transform_1, window_bounds = array<i64: 192, 128>}, {pipeline_mode = #tpu.pipeline_mode<synchronous>, transform_indices = @transform_2, window_bounds = array<i64: 3, 128, 256>}, {pipeline_mode = #tpu.pipeline_mode<synchronous>, transform_indices = @transform_3, window_bounds = array<i64: 1, 256>}, {transform_indices = @transform_4, window_bounds = array<i64: 192, 256>}, {transform_indices = @transform_5, window_bounds = array<i64: 1, 2, 256>}]} {
    %c0_i32 = arith.constant 0 : i32
    %0 = arith.cmpi eq, %arg0, %c0_i32 : i32
    %1 = arith.extui %0 : i1 to i32
    %c0_i32_0 = arith.constant 0 : i32
    %2 = arith.cmpi ne, %1, %c0_i32_0 : i32
    scf.if %2 {
      "tpu.region"() ({
        %40 = tpu.sem_alloc : memref<!tpu.dma_semaphore, #tpu.memory_space<semaphore_mem>>
        tpu.enqueue_dma source(%arg1 : memref<192x192xbf16, #tpu.memory_space<any>>) target(%arg7 : memref<192x192xbf16, #tpu.memory_space<vmem>>) target_semaphore(%40 : memref<!tpu.dma_semaphore, #tpu.memory_space<semaphore_mem>>)
        tpu.wait_dma2 semaphore(%40 : memref<!tpu.dma_semaphore, #tpu.memory_space<semaphore_mem>>) src(%arg1 : memref<192x192xbf16, #tpu.memory_space<any>>) dst(%arg7 : memref<192x192xbf16, #tpu.memory_space<vmem>>)
        tpu.yield
      }) : () -> ()
    } else {
    }
    %c0 = arith.constant 0 : index
    %c0_1 = arith.constant 0 : index
    %3 = vector.load %arg2[%c0, %c0_1] : memref<192x128xbf16, #tpu.memory_space<vmem>>, vector<192x128xbf16>
    %c0_2 = arith.constant 0 : index
    %c0_3 = arith.constant 0 : index
    %c0_4 = arith.constant 0 : index
    %4 = vector.load %arg3[%c0_2, %c0_3, %c0_4] : memref<3x128x256xbf16, #tpu.memory_space<vmem>>, vector<1x128x256xbf16>
    %5 = vector.shape_cast %4 : vector<1x128x256xbf16> to vector<128x256xbf16>
    %cst = arith.constant dense<0.000000e+00> : vector<192x256xf32>
    %6 = tpu.matmul %3, %5, %cst {dimension_numbers = #tpu.dot_dimension_numbers<[1], [0], [0], [1], [0, 0, 1, 1], [], []>} : vector<192x128xbf16>, vector<128x256xbf16>, vector<192x256xf32> -> vector<192x256xf32>
    %c0_5 = arith.constant 0 : index
    %c0_6 = arith.constant 0 : index
    %7 = vector.load %arg7[%c0_5, %c0_6] : memref<192x192xbf16, #tpu.memory_space<vmem>>, vector<192x192xbf16>
    %cst_7 = arith.constant dense<0.000000e+00> : vector<192x128xf32>
    %8 = tpu.matmul %7, %3, %cst_7 {dimension_numbers = #tpu.dot_dimension_numbers<[1], [0], [0], [1], [0, 0, 1, 1], [], []>} : vector<192x192xbf16>, vector<192x128xbf16>, vector<192x128xf32> -> vector<192x128xf32>
    %9 = arith.truncf %8 : vector<192x128xf32> to vector<192x128xbf16>
    %c1 = arith.constant 1 : index
    %c0_8 = arith.constant 0 : index
    %c0_9 = arith.constant 0 : index
    %10 = vector.load %arg3[%c1, %c0_8, %c0_9] : memref<3x128x256xbf16, #tpu.memory_space<vmem>>, vector<1x128x256xbf16>
    %11 = vector.shape_cast %10 : vector<1x128x256xbf16> to vector<128x256xbf16>
    %cst_10 = arith.constant dense<0.000000e+00> : vector<192x256xf32>
    %12 = tpu.matmul %9, %11, %cst_10 {dimension_numbers = #tpu.dot_dimension_numbers<[1], [0], [0], [1], [0, 0, 1, 1], [], []>} : vector<192x128xbf16>, vector<128x256xbf16>, vector<192x256xf32> -> vector<192x256xf32>
    %13 = arith.addf %6, %12 : vector<192x256xf32>
    %14 = arith.extf %3 : vector<192x128xbf16> to vector<192x128xf32>
    %cst_11 = arith.constant 2.000000e+00 : f32
    %15 = vector.broadcast %cst_11 : f32 to vector<192x128xf32>
    %16 = arith.mulf %15, %14 : vector<192x128xf32>
    %17 = arith.truncf %8 : vector<192x128xf32> to vector<192x128xbf16>
    %cst_12 = arith.constant dense<0.000000e+00> : vector<192x128xf32>
    %18 = tpu.matmul %7, %17, %cst_12 {dimension_numbers = #tpu.dot_dimension_numbers<[1], [0], [0], [1], [0, 0, 1, 1], [], []>} : vector<192x192xbf16>, vector<192x128xbf16>, vector<192x128xf32> -> vector<192x128xf32>
    %19 = arith.subf %18, %16 : vector<192x128xf32>
    %20 = arith.truncf %19 : vector<192x128xf32> to vector<192x128xbf16>
    %c2 = arith.constant 2 : index
    %c0_13 = arith.constant 0 : index
    %c0_14 = arith.constant 0 : index
    %21 = vector.load %arg3[%c2, %c0_13, %c0_14] : memref<3x128x256xbf16, #tpu.memory_space<vmem>>, vector<1x128x256xbf16>
    %22 = vector.shape_cast %21 : vector<1x128x256xbf16> to vector<128x256xbf16>
    %cst_15 = arith.constant dense<0.000000e+00> : vector<192x256xf32>
    %23 = tpu.matmul %20, %22, %cst_15 {dimension_numbers = #tpu.dot_dimension_numbers<[1], [0], [0], [1], [0, 0, 1, 1], [], []>} : vector<192x128xbf16>, vector<128x256xbf16>, vector<192x256xf32> -> vector<192x256xf32>
    %24 = arith.addf %13, %23 : vector<192x256xf32>
    %c0_16 = arith.constant 0 : index
    %c0_17 = arith.constant 0 : index
    %25 = vector.load %arg4[%c0_16, %c0_17] : memref<1x256xf32, #tpu.memory_space<vmem>>, vector<1x256xf32>
    %26 = vector.broadcast %25 : vector<1x256xf32> to vector<192x256xf32>
    %27 = arith.addf %24, %26 : vector<192x256xf32>
    %c0_18 = arith.constant 0 : index
    %c0_19 = arith.constant 0 : index
    %28 = vector.load %arg5[%c0_18, %c0_19] : memref<192x256xf32, #tpu.memory_space<vmem>>, vector<192x256xf32>
    tpu.vector_store %arg5[%c0_18, %c0_19], %27 {strides = array<i32>} : memref<192x256xf32, #tpu.memory_space<vmem>>, vector<192x256xf32>,
    %cst_20 = arith.constant dense<0.000000e+00> : vector<256xf32>
    %29 = vector.multi_reduction <add>, %27, %cst_20 [0] : vector<192x256xf32> to vector<256xf32>
    %30 = vector.shape_cast %29 : vector<256xf32> to vector<1x256xf32>
    %c0_21 = arith.constant 0 : index
    %c0_22 = arith.constant 0 : index
    %c0_23 = arith.constant 0 : index
    %31 = vector.load %arg6[%c0_21, %c0_22, %c0_23] : memref<1x2x256xf32, #tpu.memory_space<vmem>>, vector<1x1x256xf32>
    %32 = vector.shape_cast %31 : vector<1x1x256xf32> to vector<1x256xf32>
    %33 = vector.shape_cast %30 : vector<1x256xf32> to vector<1x1x256xf32>
    tpu.vector_store %arg6[%c0_21, %c0_22, %c0_23], %33 {strides = array<i32>} : memref<1x2x256xf32, #tpu.memory_space<vmem>>, vector<1x1x256xf32>,
    %34 = arith.mulf %27, %27 : vector<192x256xf32>
    %cst_24 = arith.constant dense<0.000000e+00> : vector<256xf32>
    %35 = vector.multi_reduction <add>, %34, %cst_24 [0] : vector<192x256xf32> to vector<256xf32>
    %36 = vector.shape_cast %35 : vector<256xf32> to vector<1x256xf32>
    %c0_25 = arith.constant 0 : index
    %c1_26 = arith.constant 1 : index
    %c0_27 = arith.constant 0 : index
    %37 = vector.load %arg6[%c0_25, %c1_26, %c0_27] : memref<1x2x256xf32, #tpu.memory_space<vmem>>, vector<1x1x256xf32>
    %38 = vector.shape_cast %37 : vector<1x1x256xf32> to vector<1x256xf32>
    %39 = vector.shape_cast %36 : vector<1x256xf32> to vector<1x1x256xf32>
    tpu.vector_store %arg6[%c0_25, %c1_26, %c0_27], %39 {strides = array<i32>} : memref<1x2x256xf32, #tpu.memory_space<vmem>>, vector<1x1x256xf32>,
    return
  }
  func.func @transform_1(%arg0: i32) -> (i32, i32) {
    %c0_i32 = arith.constant 0 : i32
    %c0_i32_0 = arith.constant 0 : i32
    return %c0_i32, %arg0 : i32, i32
  }
  func.func @transform_2(%arg0: i32) -> (i32, i32, i32) {
    %c0_i32 = arith.constant 0 : i32
    %c0_i32_0 = arith.constant 0 : i32
    %c0_i32_1 = arith.constant 0 : i32
    %c0_i32_2 = arith.constant 0 : i32
    return %c0_i32, %c0_i32_0, %c0_i32_1 : i32, i32, i32
  }
  func.func @transform_3(%arg0: i32) -> (i32, i32) {
    %c0_i32 = arith.constant 0 : i32
    %c0_i32_0 = arith.constant 0 : i32
    %c0_i32_1 = arith.constant 0 : i32
    return %c0_i32, %c0_i32_0 : i32, i32
  }
  func.func @transform_4(%arg0: i32) -> (i32, i32) {
    %c0_i32 = arith.constant 0 : i32
    %c0_i32_0 = arith.constant 0 : i32
    return %c0_i32, %arg0 : i32, i32
  }
  func.func @transform_5(%arg0: i32) -> (i32, i32, i32) {
    %c0_i32 = arith.constant 0 : i32
    %c0_i32_0 = arith.constant 0 : i32
    %c0_i32_1 = arith.constant 0 : i32
    return %arg0, %c0_i32, %c0_i32_0 : i32, i32, i32
  }
}

</mosaic_0001>

<llo_original>
// kernel: tpu_custom_call.1
$region0: #{tpu_custom_call.1}
  #allocation0 [shape = 'u32[]', space=smem, size = 0x4, offset = 0x4, fixed_abs, tag = 'smem constant byte address 0x4 - core index']
  #allocation1 [shape = 'u32[144,128]{1,0:T(1,128)}', space=vmem, size = 0x12000, scoped, tag = 'internal scratch']
  #allocation2 [shape = 'bf16[192,192]{1,0:T(8,128)(2,1)}', space=vmem, size = 0x18000, scoped, tag = 'scratch operand']
  #allocation12 [shape = 's32[]', space=sflag, size = 0x4, offset = 0, fixed_abs, tag = 'sflag constant byte address 0x0 - dummy sync flag']
  #allocation13 [shape = 's32[]', space=sflag, size = 0x4, offset = 0, fixed_abs, tag = 'sflag constant byte address 0x0 - dummy sync flag']
  #allocation14 [shape = 'u32[]', space=smem, size = 0x4, offset = 0x44, fixed_abs, tag = 'smem constant byte address 0x44 - assertion arg 0']
  #allocation15 [shape = 'u32[]', space=smem, size = 0x4, offset = 0x48, fixed_abs, tag = 'smem constant byte address 0x48 - assertion arg 1']
  %s0 = inlined_call_operand.hbm [shape: bf16[192,192], index: 0, kind: input, shape index: {}]
  %s1 = inlined_call_operand.hbm [shape: bf16[192,128], index: 1, kind: input, shape index: {}]
  %s2 = inlined_call_operand.hbm [shape: bf16[3,128,256], index: 2, kind: input, shape index: {}]
  %s3 = inlined_call_operand.vmem [shape: f32[1,256], index: 3, kind: input, shape index: {}]
  %s4 = inlined_call_operand.hbm [shape: f32[192,256], index: 4, kind: output, shape index: {0}]
  %s5 = inlined_call_operand.hbm [shape: f32[1,2,256], index: 5, kind: output, shape index: {1}]
  %6 = xla_tuple %s4, %s5
  %s7 = sld [smem:[#allocation0]]
  $region47: #{tpu_custom_call.1} parent=0
    _
  %s9 = ssub.s32 1, %s7
  %s10 = scalar_select 0, %s9, %s7
  $region1: #{tpu_custom_call.1} parent=0
    #allocation3 [shape = 'u8[49152]{0}', space=vmem, size = 0xc000, scoped, tag = 'input window, operand 1, single buffered']
    #allocation4 [shape = 's32[1]{0}', space=sflag, size = 0x4, scoped, tag = 'scoped memory for tpu_custom_call.1']
    #allocation5 [shape = 's32[1]{0}', space=sflag, size = 0x4, scoped, tag = 'scoped memory for tpu_custom_call.1']
    #allocation6 [shape = 'u8[196608]{0}', space=vmem, size = 0x30000, scoped, tag = 'input window, operand 2, single buffered']
    #allocation7 [shape = 's32[1]{0}', space=sflag, size = 0x4, scoped, tag = 'scoped memory for tpu_custom_call.1']
    #allocation8 [shape = 'u8[196608]{0}', space=vmem, size = 0x30000, scoped, tag = 'output window, operand 0, single buffered']
    #allocation9 [shape = 'u8[2048]{0}', space=vmem, size = 0x800, scoped, tag = 'output window, operand 1, single buffered']
    #allocation10 [shape = 's32[1]{0}', space=sflag, size = 0x4, scoped, tag = 'scoped memory for tpu_custom_call.1']
    %11 = vsyncpa [#allocation4], 0
    %12 = vsyncpa [#allocation7], 0
    %13 = vsyncpa [#allocation5], 0
    %14 = vsyncpa [#allocation10], 0
    // Predicated region
    $region2: #{tpu_custom_call.1} parent=1 // pred_check
      _
    $region3: #{tpu_custom_call.1} parent=1 // pred_check_branch
      %16 = sbr.rel (0) target = $region5
    $region4: #{tpu_custom_call.1} parent=1 // pred_region
      %s18 = ssub.s32 1536, 1536
      %19 = vsyncadd [#allocation4], %s18
      %s20 = sshll.u32 [#allocation3], 4
      %s21 = int_to_ptr.vmem [resolvable:$true] %s20
      %26 = dma.hbm_to_vmem [thread:$0]  %s1, 1536, %s21, [#allocation4], 64, 64, 4
    $region5: #{tpu_custom_call.1} parent=1 // pred_fallthru
      _
    // Predicated region
    $region6: #{tpu_custom_call.1} parent=1 // pred_check
      _
    $region7: #{tpu_custom_call.1} parent=1 // pred_check_branch
      %28 = sbr.rel (0) target = $region9
    $region8: #{tpu_custom_call.1} parent=1 // pred_region
      %s30 = ssub.s32 6144, 6144
      %31 = vsyncadd [#allocation7], %s30
      %s32 = sshll.u32 [#allocation6], 4
      %s33 = int_to_ptr.vmem [resolvable:$true] %s32
      %38 = dma.hbm_to_vmem [thread:$0]  %s2, 6144, %s33, [#allocation7], 128, 128, 8
    $region9: #{tpu_custom_call.1} parent=1 // pred_fallthru
      _
    // Predicated region
    $region10: #{tpu_custom_call.1} parent=1 // pred_check
      _
    $region11: #{tpu_custom_call.1} parent=1 // pred_check_branch
      %40 = sbr.rel (0) target = $region13
    $region12: #{tpu_custom_call.1} parent=1 // pred_region
      _
    $region13: #{tpu_custom_call.1} parent=1 // pred_fallthru
      _
    // Predicated region
    $region14: #{tpu_custom_call.1} parent=1 // pred_check
      _
    $region15: #{tpu_custom_call.1} parent=1 // pred_check_branch
      %42 = sbr.rel (0) target = $region17
    $region16: #{tpu_custom_call.1} parent=1 // pred_region
      %43 = dma.done [#allocation4], 1536
    $region17: #{tpu_custom_call.1} parent=1 // pred_fallthru
      _
    // Predicated region
    $region18: #{tpu_custom_call.1} parent=1 // pred_check
      _
    $region19: #{tpu_custom_call.1} parent=1 // pred_check_branch
      %45 = sbr.rel (0) target = $region21
    $region20: #{tpu_custom_call.1} parent=1 // pred_region
      %46 = dma.done [#allocation7], 6144
    $region21: #{tpu_custom_call.1} parent=1 // pred_fallthru
      _
    %p48 = scmp.eq.s32.totalorder 0, 0
    // Predicated region
    $region22: #{tpu_custom_call.1} parent=1 // pred_check
      %p49 = pneg %p48
    $region23: #{tpu_custom_call.1} parent=1 // pred_check_branch
      %51 = sbr.rel (%p49) target = $region25
    $region24: #{tpu_custom_call.1} parent=1 // pred_region
      $region26: #{tpu_custom_call.1} parent=24
        #allocation11 [shape = 's32[1]{0}', space=sflag, size = 0x4, scoped, tag = 'scoped memory for tpu_custom_call.1']
        // Predicated region
        $region27: #{tpu_custom_call.1} parent=26 // pred_check
          _
        $region28: #{tpu_custom_call.1} parent=26 // pred_check_branch
          %53 = sbr.rel target = $region30
        $region29: #{tpu_custom_call.1} parent=26 // pred_region
          %54 = sst [smem:[#allocation14]] [#allocation13]
          %55 = sst [smem:[#allocation15]] [#allocation12]
        $region30: #{tpu_custom_call.1} parent=26 // pred_fallthru
          _
        %57 = shalt.err (0)
        %s59 = sshll.u32 [#allocation2], 4
        %s60 = int_to_ptr.vmem [resolvable:$true] %s59
        %62 = dma.hbm_to_vmem [thread:$0]  %s0, 3072, %s60, [#allocation11]
        %s63 = smul.u32 4, 24
        %s64 = smul.u32 %s63, 2
        %s65 = sshll.u32 %s64, 4
        %66 = dma.done [#allocation11], %s65
    $region25: #{tpu_custom_call.1} parent=1 // pred_fallthru
      _
    %v67 = vld [vmem:[#allocation3] sm:$0xf]
    %v68 = vld [vmem:[#allocation3 + $0x4] sm:$0xf]
    %v69 = vld [vmem:[#allocation3 + $0x8] sm:$0xf]
    %v70 = vld [vmem:[#allocation3 + $0xc] sm:$0xf]
    %v71 = vld [vmem:[#allocation3 + $0x10] sm:$0xf]
    %v72 = vld [vmem:[#allocation3 + $0x14] sm:$0xf]
    %v73 = vld [vmem:[#allocation3 + $0x18] sm:$0xf]
    %v74 = vld [vmem:[#allocation3 + $0x1c] sm:$0xf]
    %v75 = vld [vmem:[#allocation3 + $0x20] sm:$0xf]
    %v76 = vld [vmem:[#allocation3 + $0x24] sm:$0xf]
    %v77 = vld [vmem:[#allocation3 + $0x28] sm:$0xf]
    %v78 = vld [vmem:[#allocation3 + $0x2c] sm:$0xf]
    %v79 = vld [vmem:[#allocation3 + $0x30] sm:$0xf]
    %v80 = vld [vmem:[#allocation3 + $0x34] sm:$0xf]
    %v81 = vld [vmem:[#allocation3 + $0x38] sm:$0xf]
    %v82 = vld [vmem:[#allocation3 + $0x3c] sm:$0xf]
    %v83 = vld [vmem:[#allocation3 + $0x40] sm:$0xf]
    %v84 = vld [vmem:[#allocation3 + $0x44] sm:$0xf]
    %v85 = vld [vmem:[#allocation3 + $0x48] sm:$0xf]
    %v86 = vld [vmem:[#allocation3 + $0x4c] sm:$0xf]
    %v87 = vld [vmem:[#allocation3 + $0x50] sm:$0xf]
    %v88 = vld [vmem:[#allocation3 + $0x54] sm:$0xf]
    %v89 = vld [vmem:[#allocation3 + $0x58] sm:$0xf]
    %v90 = vld [vmem:[#allocation3 + $0x5c] sm:$0xf]
    %v91 = vld [vmem:[#allocation6] sm:$0xff]
    %v92 = vld [vmem:[#allocation6 + $0x8] sm:$0xff]
    %v93 = vld [vmem:[#allocation6 + $0x10] sm:$0xff]
    %v94 = vld [vmem:[#allocation6 + $0x18] sm:$0xff]
    %v95 = vld [vmem:[#allocation6 + $0x20] sm:$0xff]
    %v96 = vld [vmem:[#allocation6 + $0x28] sm:$0xff]
    %v97 = vld [vmem:[#allocation6 + $0x30] sm:$0xff]
    %v98 = vld [vmem:[#allocation6 + $0x38] sm:$0xff]
    %v99 = vld [vmem:[#allocation6 + $0x40] sm:$0xff]
    %v100 = vld [vmem:[#allocation6 + $0x48] sm:$0xff]
    %v101 = vld [vmem:[#allocation6 + $0x50] sm:$0xff]
    %v102 = vld [vmem:[#allocation6 + $0x58] sm:$0xff]
    %v103 = vld [vmem:[#allocation6 + $0x60] sm:$0xff]
    %v104 = vld [vmem:[#allocation6 + $0x68] sm:$0xff]
    %v105 = vld [vmem:[#allocation6 + $0x70] sm:$0xff]
    %v106 = vld [vmem:[#allocation6 + $0x78] sm:$0xff]
    %v107 = vld [vmem:[#allocation2] sm:$0xff]
    %v108 = vld [vmem:[#allocation2 + $0x8] sm:$0xff]
    %v109 = vld [vmem:[#allocation2 + $0x10] sm:$0xff]
    %v110 = vld [vmem:[#allocation2 + $0x18] sm:$0xff]
    %v111 = vld [vmem:[#allocation2 + $0x20] sm:$0xff]
    %v112 = vld [vmem:[#allocation2 + $0x28] sm:$0xff]
    %v113 = vld [vmem:[#allocation2 + $0x30] sm:$0xff]
    %v114 = vld [vmem:[#allocation2 + $0x38] sm:$0xff]
    %v115 = vld [vmem:[#allocation2 + $0x40] sm:$0xff]
    %v116 = vld [vmem:[#allocation2 + $0x48] sm:$0xff]
    %v117 = vld [vmem:[#allocation2 + $0x50] sm:$0xff]
    %v118 = vld [vmem:[#allocation2 + $0x58] sm:$0xff]
    %v119 = vld [vmem:[#allocation2 + $0x60] sm:$0xff]
    %v120 = vld [vmem:[#allocation2 + $0x68] sm:$0xff]
    %v121 = vld [vmem:[#allocation2 + $0x70] sm:$0xff]
    %v122 = vld [vmem:[#allocation2 + $0x78] sm:$0xff]
    %v123 = vld [vmem:[#allocation2 + $0x80] sm:$0xff]
    %v124 = vld [vmem:[#allocation2 + $0x88] sm:$0xff]
    %v125 = vld [vmem:[#allocation2 + $0x90] sm:$0xff]
    %v126 = vld [vmem:[#allocation2 + $0x98] sm:$0xff]
    %v127 = vld [vmem:[#allocation2 + $0xa0] sm:$0xff]
    %v128 = vld [vmem:[#allocation2 + $0xa8] sm:$0xff]
    %v129 = vld [vmem:[#allocation2 + $0xb0] sm:$0xff]
    %v130 = vld [vmem:[#allocation2 + $0xb8] sm:$0xff]
    %v155 = vunpack.c.l.b16 %v107
    %v156 = vunpack.c.h.b16 %v107
    %v157 = vunpack.c.l.b16 %v108
    %v158 = vunpack.c.h.b16 %v108
    %v159 = vunpack.c.l.b16 %v109
    %v160 = vunpack.c.h.b16 %v109
    %v161 = vunpack.c.l.b16 %v110
    %v162 = vunpack.c.h.b16 %v110
    %v163 = vunpack.c.l.b16 %v111
    %v164 = vunpack.c.h.b16 %v111
    %v165 = vunpack.c.l.b16 %v112
    %v166 = vunpack.c.h.b16 %v112
    %v167 = vunpack.c.l.b16 %v113
    %v168 = vunpack.c.h.b16 %v113
    %v169 = vunpack.c.l.b16 %v114
    %v170 = vunpack.c.h.b16 %v114
    %v171 = vunpack.c.l.b16 %v115
    %v172 = vunpack.c.h.b16 %v115
    %v173 = vunpack.c.l.b16 %v116
    %v174 = vunpack.c.h.b16 %v116
    %v175 = vunpack.c.l.b16 %v117
    %v176 = vunpack.c.h.b16 %v117
    %v177 = vunpack.c.l.b16 %v118
    %v178 = vunpack.c.h.b16 %v118
    %v179 = vunpack.c.l.b16 %v119
    %v180 = vunpack.c.h.b16 %v119
    %v181 = vunpack.c.l.b16 %v120
    %v182 = vunpack.c.h.b16 %v120
    %v183 = vunpack.c.l.b16 %v121
    %v184 = vunpack.c.h.b16 %v121
    %v185 = vunpack.c.l.b16 %v122
    %v186 = vunpack.c.h.b16 %v122
    %v187 = vunpack.c.l.b16 %v123
    %v188 = vunpack.c.h.b16 %v123
    %v189 = vunpack.c.l.b16 %v124
    %v190 = vunpack.c.h.b16 %v124
    %v191 = vunpack.c.l.b16 %v125
    %v192 = vunpack.c.h.b16 %v125
    %v193 = vunpack.c.l.b16 %v126
    %v194 = vunpack.c.h.b16 %v126
    %v195 = vunpack.c.l.b16 %v127
    %v196 = vunpack.c.h.b16 %v127
    %v197 = vunpack.c.l.b16 %v128
    %v198 = vunpack.c.h.b16 %v128
    %v199 = vunpack.c.l.b16 %v129
    %v200 = vunpack.c.h.b16 %v129
    %v201 = vunpack.c.l.b16 %v130
    %v202 = vunpack.c.h.b16 %v130
    %v203 = vpack.c.b16 %v157, %v155
    %v204 = vpack.c.b16 %v158, %v156
    %v205 = vpack.c.b16 %v161, %v159
    %v206 = vpack.c.b16 %v162, %v160
    %v207 = vpack.c.b16 %v165, %v163
    %v208 = vpack.c.b16 %v166, %v164
    %v209 = vpack.c.b16 %v169, %v167
    %v210 = vpack.c.b16 %v170, %v168
    %v211 = vpack.c.b16 %v173, %v171
    %v212 = vpack.c.b16 %v174, %v172
    %v213 = vpack.c.b16 %v177, %v175
    %v214 = vpack.c.b16 %v178, %v176
    %v215 = vpack.c.b16 %v181, %v179
    %v216 = vpack.c.b16 %v182, %v180
    %v217 = vpack.c.b16 %v185, %v183
    %v218 = vpack.c.b16 %v186, %v184
    %v219 = vpack.c.b16 %v189, %v187
    %v220 = vpack.c.b16 %v190, %v188
    %v221 = vpack.c.b16 %v193, %v191
    %v222 = vpack.c.b16 %v194, %v192
    %v223 = vpack.c.b16 %v197, %v195
    %v224 = vpack.c.b16 %v198, %v196
    %v225 = vpack.c.b16 %v201, %v199
    %v226 = vpack.c.b16 %v202, %v200
    %v263 = vunpack.c.l.b16 %v67
    %v264 = vunpack.c.l.b16 %v68
    %v265 = vunpack.c.l.b16 %v69
    %v266 = vunpack.c.l.b16 %v70
    %v267 = vunpack.c.l.b16 %v71
    %v268 = vunpack.c.l.b16 %v72
    %v269 = vunpack.c.l.b16 %v73
    %v270 = vunpack.c.l.b16 %v74
    %v271 = vunpack.c.l.b16 %v75
    %v272 = vunpack.c.l.b16 %v76
    %v273 = vunpack.c.l.b16 %v77
    %v274 = vunpack.c.l.b16 %v78
    %v275 = vunpack.c.l.b16 %v79
    %v276 = vunpack.c.l.b16 %v80
    %v277 = vunpack.c.l.b16 %v81
    %v278 = vunpack.c.l.b16 %v82
    %v279 = vunpack.c.l.b16 %v83
    %v280 = vunpack.c.l.b16 %v84
    %v281 = vunpack.c.l.b16 %v85
    %v282 = vunpack.c.l.b16 %v86
    %v283 = vunpack.c.l.b16 %v87
    %v284 = vunpack.c.l.b16 %v88
    %v285 = vunpack.c.l.b16 %v89
    %v286 = vunpack.c.l.b16 %v90
    %v287 = vpack.c.b16 %v264, %v263
    %v288 = vpack.c.b16 %v266, %v265
    %v289 = vpack.c.b16 %v268, %v267
    %v290 = vpack.c.b16 %v270, %v269
    %v291 = vpack.c.b16 %v272, %v271
    %v292 = vpack.c.b16 %v274, %v273
    %v293 = vpack.c.b16 %v276, %v275
    %v294 = vpack.c.b16 %v278, %v277
    %v295 = vpack.c.b16 %v280, %v279
    %v296 = vpack.c.b16 %v282, %v281
    %v297 = vpack.c.b16 %v284, %v283
    %v298 = vpack.c.b16 %v286, %v285
    %vm311 = vcmask 523264
    %v313 = vsel %vm311, %v204, 0
    %v316 = vsel %vm311, %v206, 0
    %v319 = vsel %vm311, %v208, 0
    %v322 = vsel %vm311, %v210, 0
    %v325 = vsel %vm311, %v212, 0
    %v328 = vsel %vm311, %v214, 0
    %v331 = vsel %vm311, %v216, 0
    %v334 = vsel %vm311, %v218, 0
    %v337 = vsel %vm311, %v220, 0
    %v340 = vsel %vm311, %v222, 0
    %v343 = vsel %vm311, %v224, 0
    %v346 = vsel %vm311, %v226, 0
    %348 = vmatprep.subr.bf16.mxu0 0
    %349 = vmatpush1.bf16.msra.mxu0 %v294
    %350 = vmatprep.subr.bf16.mxu0 0
    %351 = vmatpush1.bf16.msra.mxu0 %v293
    %352 = vmatprep.subr.bf16.mxu0 0
    %353 = vmatpush1.bf16.msra.mxu0 %v292
    %354 = vmatprep.subr.bf16.mxu0 0
    %355 = vmatpush1.bf16.msra.mxu0 %v291
    %356 = vmatprep.subr.bf16.mxu0 0
    %357 = vmatpush1.bf16.msra.mxu0 %v290
    %358 = vmatprep.subr.bf16.mxu0 0
    %359 = vmatpush1.bf16.msra.mxu0 %v289
    %360 = vmatprep.subr.bf16.mxu0 0
    %361 = vmatpush1.bf16.msra.mxu0 %v288
    %362 = vmatprep.subr.bf16.mxu0 0
    %363 = vmatpush1.bf16.msra.mxu0 %v287
    %364 = vmatprep.subr.bf16.mxu0 0
    %365 = vmatpush2.bf16.msra.mxu0 0
    %366 = vmatprep.subr.bf16.mxu0 0
    %367 = vmatpush2.bf16.msra.mxu0 0
    %368 = vmatprep.subr.bf16.mxu0 0
    %369 = vmatpush2.bf16.msra.mxu0 0
    %370 = vmatprep.subr.bf16.mxu0 0
    %371 = vmatpush2.bf16.msra.mxu0 0
    %372 = vmatprep.subr.bf16.mxu0 0
    %373 = vmatpush2.bf16.msra.mxu0 %v298
    %374 = vmatprep.subr.bf16.mxu0 0
    %375 = vmatpush2.bf16.msra.mxu0 %v297
    %376 = vmatprep.subr.bf16.mxu0 0
    %377 = vmatpush2.bf16.msra.mxu0 %v296
    %378 = vmatprep.subr.bf16.mxu0 0
    %379 = vmatpush2.bf16.msra.mxu0 %v295
    %380 = vmatprep.mubr.bf16.mxu0 %v313
    %381 = vmatmul.mubr.bf16.gmra.mxu0 %v203
    %v382 = vpop.f32.mrf.mxu0
    %v383 = vadd.f32 0.0, %v382
    %v384 = vpop.f32.mrf.mxu0
    %v385 = vpop.f32.mrf.mxu0
    %v386 = vadd.f32 0.0, %v385
    %v387 = vpop.f32.mrf.mxu0
    %388 = vmatprep.mubr.bf16.mxu0 %v316
    %389 = vmatmul.mubr.bf16.gmra.mxu0 %v205
    %v390 = vpop.f32.mrf.mxu0
    %v391 = vadd.f32 0.0, %v390
    %v392 = vpop.f32.mrf.mxu0
    %v393 = vpop.f32.mrf.mxu0
    %v394 = vadd.f32 0.0, %v393
    %v395 = vpop.f32.mrf.mxu0
    %396 = vmatprep.mubr.bf16.mxu0 %v319
    %397 = vmatmul.mubr.bf16.gmra.mxu0 %v207
    %v398 = vpop.f32.mrf.mxu0
    %v399 = vadd.f32 0.0, %v398
    %v400 = vpop.f32.mrf.mxu0
    %v401 = vpop.f32.mrf.mxu0
    %v402 = vadd.f32 0.0, %v401
    %v403 = vpop.f32.mrf.mxu0
    %404 = vmatprep.mubr.bf16.mxu0 %v322
    %405 = vmatmul.mubr.bf16.gmra.mxu0 %v209
    %v406 = vpop.f32.mrf.mxu0
    %v407 = vadd.f32 0.0, %v406
    %v408 = vpop.f32.mrf.mxu0
    %v409 = vpop.f32.mrf.mxu0
    %v410 = vadd.f32 0.0, %v409
    %v411 = vpop.f32.mrf.mxu0
    %412 = vmatprep.mubr.bf16.mxu0 %v325
    %413 = vmatmul.mubr.bf16.gmra.mxu0 %v211
    %v414 = vpop.f32.mrf.mxu0
    %v415 = vadd.f32 0.0, %v414
    %v416 = vpop.f32.mrf.mxu0
    %v417 = vpop.f32.mrf.mxu0
    %v418 = vadd.f32 0.0, %v417
    %v419 = vpop.f32.mrf.mxu0
    %420 = vmatprep.mubr.bf16.mxu0 %v328
    %421 = vmatmul.mubr.bf16.gmra.mxu0 %v213
    %v422 = vpop.f32.mrf.mxu0
    %v423 = vadd.f32 0.0, %v422
    %v424 = vpop.f32.mrf.mxu0
    %v425 = vpop.f32.mrf.mxu0
    %v426 = vadd.f32 0.0, %v425
    %v427 = vpop.f32.mrf.mxu0
    %428 = vmatprep.mubr.bf16.mxu0 %v331
    %429 = vmatmul.mubr.bf16.gmra.mxu0 %v215
    %v430 = vpop.f32.mrf.mxu0
    %v431 = vadd.f32 0.0, %v430
    %v432 = vpop.f32.mrf.mxu0
    %v433 = vpop.f32.mrf.mxu0
    %v434 = vadd.f32 0.0, %v433
    %v435 = vpop.f32.mrf.mxu0
    %436 = vmatprep.mubr.bf16.mxu0 %v334
    %437 = vmatmul.mubr.bf16.gmra.mxu0 %v217
    %v438 = vpop.f32.mrf.mxu0
    %v439 = vadd.f32 0.0, %v438
    %v440 = vpop.f32.mrf.mxu0
    %v441 = vpop.f32.mrf.mxu0
    %v442 = vadd.f32 0.0, %v441
    %v443 = vpop.f32.mrf.mxu0
    %444 = vmatprep.mubr.bf16.mxu0 %v337
    %445 = vmatmul.mubr.bf16.gmra.mxu0 %v219
    %v446 = vpop.f32.mrf.mxu0
    %v447 = vadd.f32 0.0, %v446
    %v448 = vpop.f32.mrf.mxu0
    %v449 = vpop.f32.mrf.mxu0
    %v450 = vadd.f32 0.0, %v449
    %v451 = vpop.f32.mrf.mxu0
    %452 = vmatprep.mubr.bf16.mxu0 %v340
    %453 = vmatmul.mubr.bf16.gmra.mxu0 %v221
    %v454 = vpop.f32.mrf.mxu0
    %v455 = vadd.f32 0.0, %v454
    %v456 = vpop.f32.mrf.mxu0
    %v457 = vpop.f32.mrf.mxu0
    %v458 = vadd.f32 0.0, %v457
    %v459 = vpop.f32.mrf.mxu0
    %460 = vmatprep.mubr.bf16.mxu0 %v343
    %461 = vmatmul.mubr.bf16.gmra.mxu0 %v223
    %v462 = vpop.f32.mrf.mxu0
    %v463 = vadd.f32 0.0, %v462
    %v464 = vpop.f32.mrf.mxu0
    %v465 = vpop.f32.mrf.mxu0
    %v466 = vadd.f32 0.0, %v465
    %v467 = vpop.f32.mrf.mxu0
    %468 = vmatprep.mubr.bf16.mxu0 %v346
    %469 = vmatmul.mubr.bf16.gmra.mxu0 %v225
    %v470 = vpop.f32.mrf.mxu0
    %v471 = vadd.f32 0.0, %v470
    %v472 = vpop.f32.mrf.mxu0
    %v473 = vpop.f32.mrf.mxu0
    %v474 = vadd.f32 0.0, %v473
    %v475 = vpop.f32.mrf.mxu0
    %476 = vdwg.mxu0
    %v477 = vpack.c.bf16 %v386, %v383
    %v478 = vpack.c.bf16 %v394, %v391
    %v479 = vpack.c.bf16 %v402, %v399
    %v480 = vpack.c.bf16 %v410, %v407
    %v481 = vpack.c.bf16 %v418, %v415
    %v482 = vpack.c.bf16 %v426, %v423
    %v483 = vpack.c.bf16 %v434, %v431
    %v484 = vpack.c.bf16 %v442, %v439
    %v485 = vpack.c.bf16 %v450, %v447
    %v486 = vpack.c.bf16 %v458, %v455
    %v487 = vpack.c.bf16 %v466, %v463
    %v488 = vpack.c.bf16 %v474, %v471
    %s489 = scalar_lea.vmem [#allocation6], 128
    %v490 = vld [vmem:[%s489] sm:$0xff]
    %v491 = vld [vmem:[%s489 + $0x8] sm:$0xff]
    %v492 = vld [vmem:[%s489 + $0x10] sm:$0xff]
    %v493 = vld [vmem:[%s489 + $0x18] sm:$0xff]
    %v494 = vld [vmem:[%s489 + $0x20] sm:$0xff]
    %v495 = vld [vmem:[%s489 + $0x28] sm:$0xff]
    %v496 = vld [vmem:[%s489 + $0x30] sm:$0xff]
    %v497 = vld [vmem:[%s489 + $0x38] sm:$0xff]
    %v498 = vld [vmem:[%s489 + $0x40] sm:$0xff]
    %v499 = vld [vmem:[%s489 + $0x48] sm:$0xff]
    %v500 = vld [vmem:[%s489 + $0x50] sm:$0xff]
    %v501 = vld [vmem:[%s489 + $0x58] sm:$0xff]
    %v502 = vld [vmem:[%s489 + $0x60] sm:$0xff]
    %v503 = vld [vmem:[%s489 + $0x68] sm:$0xff]
    %v504 = vld [vmem:[%s489 + $0x70] sm:$0xff]
    %v505 = vld [vmem:[%s489 + $0x78] sm:$0xff]
    %v522 = vunpack.c.l.b16 %v490
    %v523 = vunpack.c.h.b16 %v490
    %v524 = vunpack.c.l.b16 %v491
    %v525 = vunpack.c.h.b16 %v491
    %v526 = vunpack.c.l.b16 %v492
    %v527 = vunpack.c.h.b16 %v492
    %v528 = vunpack.c.l.b16 %v493
    %v529 = vunpack.c.h.b16 %v493
    %v530 = vunpack.c.l.b16 %v494
    %v531 = vunpack.c.h.b16 %v494
    %v532 = vunpack.c.l.b16 %v495
    %v533 = vunpack.c.h.b16 %v495
    %v534 = vunpack.c.l.b16 %v496
    %v535 = vunpack.c.h.b16 %v496
    %v536 = vunpack.c.l.b16 %v497
    %v537 = vunpack.c.h.b16 %v497
    %v538 = vunpack.c.l.b16 %v498
    %v539 = vunpack.c.h.b16 %v498
    %v540 = vunpack.c.l.b16 %v499
    %v541 = vunpack.c.h.b16 %v499
    %v542 = vunpack.c.l.b16 %v500
    %v543 = vunpack.c.h.b16 %v500
    %v544 = vunpack.c.l.b16 %v501
    %v545 = vunpack.c.h.b16 %v501
    %v546 = vunpack.c.l.b16 %v502
    %v547 = vunpack.c.h.b16 %v502
    %v548 = vunpack.c.l.b16 %v503
    %v549 = vunpack.c.h.b16 %v503
    %v550 = vunpack.c.l.b16 %v504
    %v551 = vunpack.c.h.b16 %v504
    %v552 = vunpack.c.l.b16 %v505
    %v553 = vunpack.c.h.b16 %v505
    %v554 = vpack.c.b16 %v524, %v522
    %v555 = vpack.c.b16 %v525, %v523
    %v556 = vpack.c.b16 %v528, %v526
    %v557 = vpack.c.b16 %v529, %v527
    %v558 = vpack.c.b16 %v532, %v530
    %v559 = vpack.c.b16 %v533, %v531
    %v560 = vpack.c.b16 %v536, %v534
    %v561 = vpack.c.b16 %v537, %v535
    %v562 = vpack.c.b16 %v540, %v538
    %v563 = vpack.c.b16 %v541, %v539
    %v564 = vpack.c.b16 %v544, %v542
    %v565 = vpack.c.b16 %v545, %v543
    %v566 = vpack.c.b16 %v548, %v546
    %v567 = vpack.c.b16 %v549, %v547
    %v568 = vpack.c.b16 %v552, %v550
    %v569 = vpack.c.b16 %v553, %v551
    %586 = vmatprep.subr.bf16.mxu0 %v569
    %587 = vmatpush1.bf16.msra.mxu0 %v568
    %588 = vmatprep.subr.bf16.mxu0 %v567
    %589 = vmatpush1.bf16.msra.mxu0 %v566
    %590 = vmatprep.subr.bf16.mxu0 %v565
    %591 = vmatpush1.bf16.msra.mxu0 %v564
    %592 = vmatprep.subr.bf16.mxu0 %v563
    %593 = vmatpush1.bf16.msra.mxu0 %v562
    %594 = vmatprep.subr.bf16.mxu0 %v561
    %595 = vmatpush1.bf16.msra.mxu0 %v560
    %596 = vmatprep.subr.bf16.mxu0 %v559
    %597 = vmatpush1.bf16.msra.mxu0 %v558
    %598 = vmatprep.subr.bf16.mxu0 %v557
    %599 = vmatpush1.bf16.msra.mxu0 %v556
    %600 = vmatprep.subr.bf16.mxu0 %v555
    %601 = vmatpush1.bf16.msra.mxu0 %v554
    %602 = vmatprep.subr.bf16.mxu0 0
    %603 = vmatpush2.bf16.msra.mxu0 0
    %604 = vmatprep.subr.bf16.mxu0 0
    %605 = vmatpush2.bf16.msra.mxu0 0
    %606 = vmatprep.subr.bf16.mxu0 0
    %607 = vmatpush2.bf16.msra.mxu0 0
    %608 = vmatprep.subr.bf16.mxu0 0
    %609 = vmatpush2.bf16.msra.mxu0 0
    %610 = vmatprep.subr.bf16.mxu0 0
    %611 = vmatpush2.bf16.msra.mxu0 0
    %612 = vmatprep.subr.bf16.mxu0 0
    %613 = vmatpush2.bf16.msra.mxu0 0
    %614 = vmatprep.subr.bf16.mxu0 0
    %615 = vmatpush2.bf16.msra.mxu0 0
    %616 = vmatprep.subr.bf16.mxu0 0
    %617 = vmatpush2.bf16.msra.mxu0 0
    %618 = vmatprep.mubr.bf16.mxu0 0
    %619 = vmatmul.mubr.bf16.gmra.mxu0 %v477
    %v620 = vpop.f32.mrf.mxu0
    %v621 = vadd.f32 0.0, %v620
    %v622 = vpop.f32.mrf.mxu0
    %v623 = vadd.f32 0.0, %v622
    %v624 = vpop.f32.mrf.mxu0
    %v625 = vadd.f32 0.0, %v624
    %v626 = vpop.f32.mrf.mxu0
    %v627 = vadd.f32 0.0, %v626
    %628 = vmatprep.mubr.bf16.mxu0 0
    %629 = vmatmul.mubr.bf16.gmra.mxu0 %v478
    %v630 = vpop.f32.mrf.mxu0
    %v631 = vadd.f32 0.0, %v630
    %v632 = vpop.f32.mrf.mxu0
    %v633 = vadd.f32 0.0, %v632
    %v634 = vpop.f32.mrf.mxu0
    %v635 = vadd.f32 0.0, %v634
    %v636 = vpop.f32.mrf.mxu0
    %v637 = vadd.f32 0.0, %v636
    %638 = vmatprep.mubr.bf16.mxu0 0
    %639 = vmatmul.mubr.bf16.gmra.mxu0 %v479
    %v640 = vpop.f32.mrf.mxu0
    %v641 = vadd.f32 0.0, %v640
    %v642 = vpop.f32.mrf.mxu0
    %v643 = vadd.f32 0.0, %v642
    %v644 = vpop.f32.mrf.mxu0
    %v645 = vadd.f32 0.0, %v644
    %v646 = vpop.f32.mrf.mxu0
    %v647 = vadd.f32 0.0, %v646
    %648 = vmatprep.mubr.bf16.mxu0 0
    %649 = vmatmul.mubr.bf16.gmra.mxu0 %v480
    %v650 = vpop.f32.mrf.mxu0
    %v651 = vadd.f32 0.0, %v650
    %v652 = vpop.f32.mrf.mxu0
    %v653 = vadd.f32 0.0, %v652
    %v654 = vpop.f32.mrf.mxu0
    %v655 = vadd.f32 0.0, %v654
    %v656 = vpop.f32.mrf.mxu0
    %v657 = vadd.f32 0.0, %v656
    %658 = vmatprep.mubr.bf16.mxu0 0
    %659 = vmatmul.mubr.bf16.gmra.mxu0 %v481
    %v660 = vpop.f32.mrf.mxu0
    %v661 = vadd.f32 0.0, %v660
    %v662 = vpop.f32.mrf.mxu0
    %v663 = vadd.f32 0.0, %v662
    %v664 = vpop.f32.mrf.mxu0
    %v665 = vadd.f32 0.0, %v664
    %v666 = vpop.f32.mrf.mxu0
    %v667 = vadd.f32 0.0, %v666
    %668 = vmatprep.mubr.bf16.mxu0 0
    %669 = vmatmul.mubr.bf16.gmra.mxu0 %v482
    %v670 = vpop.f32.mrf.mxu0
    %v671 = vadd.f32 0.0, %v670
    %v672 = vpop.f32.mrf.mxu0
    %v673 = vadd.f32 0.0, %v672
    %v674 = vpop.f32.mrf.mxu0
    %v675 = vadd.f32 0.0, %v674
    %v676 = vpop.f32.mrf.mxu0
    %v677 = vadd.f32 0.0, %v676
    %678 = vmatprep.mubr.bf16.mxu0 0
    %679 = vmatmul.mubr.bf16.gmra.mxu0 %v483
    %v680 = vpop.f32.mrf.mxu0
    %v681 = vadd.f32 0.0, %v680
    %v682 = vpop.f32.mrf.mxu0
    %v683 = vadd.f32 0.0, %v682
    %v684 = vpop.f32.mrf.mxu0
    %v685 = vadd.f32 0.0, %v684
    %v686 = vpop.f32.mrf.mxu0
    %v687 = vadd.f32 0.0, %v686
    %688 = vmatprep.mubr.bf16.mxu0 0
    %689 = vmatmul.mubr.bf16.gmra.mxu0 %v484
    %v690 = vpop.f32.mrf.mxu0
    %v691 = vadd.f32 0.0, %v690
    %v692 = vpop.f32.mrf.mxu0
    %v693 = vadd.f32 0.0, %v692
    %v694 = vpop.f32.mrf.mxu0
    %v695 = vadd.f32 0.0, %v694
    %v696 = vpop.f32.mrf.mxu0
    %v697 = vadd.f32 0.0, %v696
    %698 = vmatprep.mubr.bf16.mxu0 0
    %699 = vmatmul.mubr.bf16.gmra.mxu0 %v485
    %v700 = vpop.f32.mrf.mxu0
    %v701 = vadd.f32 0.0, %v700
    %v702 = vpop.f32.mrf.mxu0
    %v703 = vadd.f32 0.0, %v702
    %v704 = vpop.f32.mrf.mxu0
    %v705 = vadd.f32 0.0, %v704
    %v706 = vpop.f32.mrf.mxu0
    %v707 = vadd.f32 0.0, %v706
    %708 = vmatprep.mubr.bf16.mxu0 0
    %709 = vmatmul.mubr.bf16.gmra.mxu0 %v486
    %v710 = vpop.f32.mrf.mxu0
    %v711 = vadd.f32 0.0, %v710
    %v712 = vpop.f32.mrf.mxu0
    %v713 = vadd.f32 0.0, %v712
    %v714 = vpop.f32.mrf.mxu0
    %v715 = vadd.f32 0.0, %v714
    %v716 = vpop.f32.mrf.mxu0
    %v717 = vadd.f32 0.0, %v716
    %718 = vmatprep.mubr.bf16.mxu0 0
    %719 = vmatmul.mubr.bf16.gmra.mxu0 %v487
    %v720 = vpop.f32.mrf.mxu0
    %v721 = vadd.f32 0.0, %v720
    %v722 = vpop.f32.mrf.mxu0
    %v723 = vadd.f32 0.0, %v722
    %v724 = vpop.f32.mrf.mxu0
    %v725 = vadd.f32 0.0, %v724
    %v726 = vpop.f32.mrf.mxu0
    %v727 = vadd.f32 0.0, %v726
    %728 = vmatprep.mubr.bf16.mxu0 0
    %729 = vmatmul.mubr.bf16.gmra.mxu0 %v488
    %v730 = vpop.f32.mrf.mxu0
    %v731 = vadd.f32 0.0, %v730
    %v732 = vpop.f32.mrf.mxu0
    %v733 = vadd.f32 0.0, %v732
    %v734 = vpop.f32.mrf.mxu0
    %v735 = vadd.f32 0.0, %v734
    %v736 = vpop.f32.mrf.mxu0
    %v737 = vadd.f32 0.0, %v736
    %738 = vdwg.mxu0
    %v755 = vunpack.c.l.b16 %v91
    %v756 = vunpack.c.h.b16 %v91
    %v757 = vunpack.c.l.b16 %v92
    %v758 = vunpack.c.h.b16 %v92
    %v759 = vunpack.c.l.b16 %v93
    %v760 = vunpack.c.h.b16 %v93
    %v761 = vunpack.c.l.b16 %v94
    %v762 = vunpack.c.h.b16 %v94
    %v763 = vunpack.c.l.b16 %v95
    %v764 = vunpack.c.h.b16 %v95
    %v765 = vunpack.c.l.b16 %v96
    %v766 = vunpack.c.h.b16 %v96
    %v767 = vunpack.c.l.b16 %v97
    %v768 = vunpack.c.h.b16 %v97
    %v769 = vunpack.c.l.b16 %v98
    %v770 = vunpack.c.h.b16 %v98
    %v771 = vunpack.c.l.b16 %v99
    %v772 = vunpack.c.h.b16 %v99
    %v773 = vunpack.c.l.b16 %v100
    %v774 = vunpack.c.h.b16 %v100
    %v775 = vunpack.c.l.b16 %v101
    %v776 = vunpack.c.h.b16 %v101
    %v777 = vunpack.c.l.b16 %v102
    %v778 = vunpack.c.h.b16 %v102
    %v779 = vunpack.c.l.b16 %v103
    %v780 = vunpack.c.h.b16 %v103
    %v781 = vunpack.c.l.b16 %v104
    %v782 = vunpack.c.h.b16 %v104
    %v783 = vunpack.c.l.b16 %v105
    %v784 = vunpack.c.h.b16 %v105
    %v785 = vunpack.c.l.b16 %v106
    %v786 = vunpack.c.h.b16 %v106
    %v787 = vpack.c.b16 %v757, %v755
    %v788 = vpack.c.b16 %v758, %v756
    %v789 = vpack.c.b16 %v761, %v759
    %v790 = vpack.c.b16 %v762, %v760
    %v791 = vpack.c.b16 %v765, %v763
    %v792 = vpack.c.b16 %v766, %v764
    %v793 = vpack.c.b16 %v769, %v767
    %v794 = vpack.c.b16 %v770, %v768
    %v795 = vpack.c.b16 %v773, %v771
    %v796 = vpack.c.b16 %v774, %v772
    %v797 = vpack.c.b16 %v777, %v775
    %v798 = vpack.c.b16 %v778, %v776
    %v799 = vpack.c.b16 %v781, %v779
    %v800 = vpack.c.b16 %v782, %v780
    %v801 = vpack.c.b16 %v785, %v783
    %v802 = vpack.c.b16 %v786, %v784
    %819 = vmatprep.subr.bf16.mxu0 %v802
    %820 = vmatpush1.bf16.msra.mxu0 %v801
    %821 = vmatprep.subr.bf16.mxu0 %v800
    %822 = vmatpush1.bf16.msra.mxu0 %v799
    %823 = vmatprep.subr.bf16.mxu0 %v798
    %824 = vmatpush1.bf16.msra.mxu0 %v797
    %825 = vmatprep.subr.bf16.mxu0 %v796
    %826 = vmatpush1.bf16.msra.mxu0 %v795
    %827 = vmatprep.subr.bf16.mxu0 %v794
    %828 = vmatpush1.bf16.msra.mxu0 %v793
    %829 = vmatprep.subr.bf16.mxu0 %v792
    %830 = vmatpush1.bf16.msra.mxu0 %v791
    %831 = vmatprep.subr.bf16.mxu0 %v790
    %832 = vmatpush1.bf16.msra.mxu0 %v789
    %833 = vmatprep.subr.bf16.mxu0 %v788
    %834 = vmatpush1.bf16.msra.mxu0 %v787
    %835 = vmatprep.subr.bf16.mxu0 0
    %836 = vmatpush2.bf16.msra.mxu0 0
    %837 = vmatprep.subr.bf16.mxu0 0
    %838 = vmatpush2.bf16.msra.mxu0 0
    %839 = vmatprep.subr.bf16.mxu0 0
    %840 = vmatpush2.bf16.msra.mxu0 0
    %841 = vmatprep.subr.bf16.mxu0 0
    %842 = vmatpush2.bf16.msra.mxu0 0
    %843 = vmatprep.subr.bf16.mxu0 0
    %844 = vmatpush2.bf16.msra.mxu0 0
    %845 = vmatprep.subr.bf16.mxu0 0
    %846 = vmatpush2.bf16.msra.mxu0 0
    %847 = vmatprep.subr.bf16.mxu0 0
    %848 = vmatpush2.bf16.msra.mxu0 0
    %849 = vmatprep.subr.bf16.mxu0 0
    %850 = vmatpush2.bf16.msra.mxu0 0
    %851 = vmatprep.mubr.bf16.mxu0 0
    %852 = vmatmul.mubr.bf16.gmra.mxu0 %v287
    %v853 = vpop.f32.mrf.mxu0
    %v854 = vadd.f32 %v621, %v853
    %v855 = vpop.f32.mrf.mxu0
    %v856 = vadd.f32 %v623, %v855
    %v857 = vpop.f32.mrf.mxu0
    %v858 = vadd.f32 %v625, %v857
    %v859 = vpop.f32.mrf.mxu0
    %v860 = vadd.f32 %v627, %v859
    %861 = vmatprep.mubr.bf16.mxu0 0
    %862 = vmatmul.mubr.bf16.gmra.mxu0 %v288
    %v863 = vpop.f32.mrf.mxu0
    %v864 = vadd.f32 %v631, %v863
    %v865 = vpop.f32.mrf.mxu0
    %v866 = vadd.f32 %v633, %v865
    %v867 = vpop.f32.mrf.mxu0
    %v868 = vadd.f32 %v635, %v867
    %v869 = vpop.f32.mrf.mxu0
    %v870 = vadd.f32 %v637, %v869
    %871 = vmatprep.mubr.bf16.mxu0 0
    %872 = vmatmul.mubr.bf16.gmra.mxu0 %v289
    %v873 = vpop.f32.mrf.mxu0
    %v874 = vadd.f32 %v641, %v873
    %v875 = vpop.f32.mrf.mxu0
    %v876 = vadd.f32 %v643, %v875
    %v877 = vpop.f32.mrf.mxu0
    %v878 = vadd.f32 %v645, %v877
    %v879 = vpop.f32.mrf.mxu0
    %v880 = vadd.f32 %v647, %v879
    %881 = vmatprep.mubr.bf16.mxu0 0
    %882 = vmatmul.mubr.bf16.gmra.mxu0 %v290
    %v883 = vpop.f32.mrf.mxu0
    %v884 = vadd.f32 %v651, %v883
    %v885 = vpop.f32.mrf.mxu0
    %v886 = vadd.f32 %v653, %v885
    %v887 = vpop.f32.mrf.mxu0
    %v888 = vadd.f32 %v655, %v887
    %v889 = vpop.f32.mrf.mxu0
    %v890 = vadd.f32 %v657, %v889
    %891 = vmatprep.mubr.bf16.mxu0 0
    %892 = vmatmul.mubr.bf16.gmra.mxu0 %v291
    %v893 = vpop.f32.mrf.mxu0
    %v894 = vadd.f32 %v661, %v893
    %v895 = vpop.f32.mrf.mxu0
    %v896 = vadd.f32 %v663, %v895
    %v897 = vpop.f32.mrf.mxu0
    %v898 = vadd.f32 %v665, %v897
    %v899 = vpop.f32.mrf.mxu0
    %v900 = vadd.f32 %v667, %v899
    %901 = vmatprep.mubr.bf16.mxu0 0
    %902 = vmatmul.mubr.bf16.gmra.mxu0 %v292
    %v903 = vpop.f32.mrf.mxu0
    %v904 = vadd.f32 %v671, %v903
    %v905 = vpop.f32.mrf.mxu0
    %v906 = vadd.f32 %v673, %v905
    %v907 = vpop.f32.mrf.mxu0
    %v908 = vadd.f32 %v675, %v907
    %v909 = vpop.f32.mrf.mxu0
    %v910 = vadd.f32 %v677, %v909
    %911 = vmatprep.mubr.bf16.mxu0 0
    %912 = vmatmul.mubr.bf16.gmra.mxu0 %v293
    %v913 = vpop.f32.mrf.mxu0
    %v914 = vadd.f32 %v681, %v913
    %v915 = vpop.f32.mrf.mxu0
    %v916 = vadd.f32 %v683, %v915
    %v917 = vpop.f32.mrf.mxu0
    %v918 = vadd.f32 %v685, %v917
    %v919 = vpop.f32.mrf.mxu0
    %v920 = vadd.f32 %v687, %v919
    %921 = vmatprep.mubr.bf16.mxu0 0
    %922 = vmatmul.mubr.bf16.gmra.mxu0 %v294
    %v923 = vpop.f32.mrf.mxu0
    %v924 = vadd.f32 %v691, %v923
    %v925 = vpop.f32.mrf.mxu0
    %v926 = vadd.f32 %v693, %v925
    %v927 = vpop.f32.mrf.mxu0
    %v928 = vadd.f32 %v695, %v927
    %v929 = vpop.f32.mrf.mxu0
    %v930 = vadd.f32 %v697, %v929
    %931 = vmatprep.mubr.bf16.mxu0 0
    %932 = vmatmul.mubr.bf16.gmra.mxu0 %v295
    %v933 = vpop.f32.mrf.mxu0
    %v934 = vadd.f32 %v701, %v933
    %v935 = vpop.f32.mrf.mxu0
    %v936 = vadd.f32 %v703, %v935
    %v937 = vpop.f32.mrf.mxu0
    %v938 = vadd.f32 %v705, %v937
    %v939 = vpop.f32.mrf.mxu0
    %v940 = vadd.f32 %v707, %v939
    %941 = vmatprep.mubr.bf16.mxu0 0
    %942 = vmatmul.mubr.bf16.gmra.mxu0 %v296
    %v943 = vpop.f32.mrf.mxu0
    %v944 = vadd.f32 %v711, %v943
    %v945 = vpop.f32.mrf.mxu0
    %v946 = vadd.f32 %v713, %v945
    %v947 = vpop.f32.mrf.mxu0
    %v948 = vadd.f32 %v715, %v947
    %v949 = vpop.f32.mrf.mxu0
    %v950 = vadd.f32 %v717, %v949
    %951 = vmatprep.mubr.bf16.mxu0 0
    %952 = vmatmul.mubr.bf16.gmra.mxu0 %v297
    %v953 = vpop.f32.mrf.mxu0
    %v954 = vadd.f32 %v721, %v953
    %v955 = vpop.f32.mrf.mxu0
    %v956 = vadd.f32 %v723, %v955
    %v957 = vpop.f32.mrf.mxu0
    %v958 = vadd.f32 %v725, %v957
    %v959 = vpop.f32.mrf.mxu0
    %v960 = vadd.f32 %v727, %v959
    %961 = vmatprep.mubr.bf16.mxu0 0
    %962 = vmatmul.mubr.bf16.gmra.mxu0 %v298
    %v963 = vpop.f32.mrf.mxu0
    %v964 = vadd.f32 %v731, %v963
    %v965 = vpop.f32.mrf.mxu0
    %v966 = vadd.f32 %v733, %v965
    %v967 = vpop.f32.mrf.mxu0
    %v968 = vadd.f32 %v735, %v967
    %v969 = vpop.f32.mrf.mxu0
    %v970 = vadd.f32 %v737, %v969
    %971 = vdwg.mxu0
    %v972 = vunpack.c.l.bf16 %v67
    %v973 = vunpack.c.l.bf16 %v68
    %v974 = vunpack.c.l.bf16 %v69
    %v975 = vunpack.c.l.bf16 %v70
    %v976 = vunpack.c.l.bf16 %v71
    %v977 = vunpack.c.l.bf16 %v72
    %v978 = vunpack.c.l.bf16 %v73
    %v979 = vunpack.c.l.bf16 %v74
    %v980 = vunpack.c.l.bf16 %v75
    %v981 = vunpack.c.l.bf16 %v76
    %v982 = vunpack.c.l.bf16 %v77
    %v983 = vunpack.c.l.bf16 %v78
    %v984 = vunpack.c.l.bf16 %v79
    %v985 = vunpack.c.l.bf16 %v80
    %v986 = vunpack.c.l.bf16 %v81
    %v987 = vunpack.c.l.bf16 %v82
    %v988 = vunpack.c.l.bf16 %v83
    %v989 = vunpack.c.l.bf16 %v84
    %v990 = vunpack.c.l.bf16 %v85
    %v991 = vunpack.c.l.bf16 %v86
    %v992 = vunpack.c.l.bf16 %v87
    %v993 = vunpack.c.l.bf16 %v88
    %v994 = vunpack.c.l.bf16 %v89
    %v995 = vunpack.c.l.bf16 %v90
    %v996 = vmul.f32 %v972, 2.0
    %v997 = vmul.f32 %v973, 2.0
    %v998 = vmul.f32 %v974, 2.0
    %v999 = vmul.f32 %v975, 2.0
    %v1000 = vmul.f32 %v976, 2.0
    %v1001 = vmul.f32 %v977, 2.0
    %v1002 = vmul.f32 %v978, 2.0
    %v1003 = vmul.f32 %v979, 2.0
    %v1004 = vmul.f32 %v980, 2.0
    %v1005 = vmul.f32 %v981, 2.0
    %v1006 = vmul.f32 %v982, 2.0
    %v1007 = vmul.f32 %v983, 2.0
    %v1008 = vmul.f32 %v984, 2.0
    %v1009 = vmul.f32 %v985, 2.0
    %v1010 = vmul.f32 %v986, 2.0
    %v1011 = vmul.f32 %v987, 2.0
    %v1012 = vmul.f32 %v988, 2.0
    %v1013 = vmul.f32 %v989, 2.0
    %v1014 = vmul.f32 %v990, 2.0
    %v1015 = vmul.f32 %v991, 2.0
    %v1016 = vmul.f32 %v992, 2.0
    %v1017 = vmul.f32 %v993, 2.0
    %v1018 = vmul.f32 %v994, 2.0
    %v1019 = vmul.f32 %v995, 2.0
    %1020 = vmatprep.subr.bf16.mxu0 0
    %1021 = vmatpush1.bf16.msra.mxu0 %v484
    %1022 = vmatprep.subr.bf16.mxu0 0
    %1023 = vmatpush1.bf16.msra.mxu0 %v483
    %1024 = vmatprep.subr.bf16.mxu0 0
    %1025 = vmatpush1.bf16.msra.mxu0 %v482
    %1026 = vmatprep.subr.bf16.mxu0 0
    %1027 = vmatpush1.bf16.msra.mxu0 %v481
    %1028 = vmatprep.subr.bf16.mxu0 0
    %1029 = vmatpush1.bf16.msra.mxu0 %v480
    %1030 = vmatprep.subr.bf16.mxu0 0
    %1031 = vmatpush1.bf16.msra.mxu0 %v479
    %1032 = vmatprep.subr.bf16.mxu0 0
    %1033 = vmatpush1.bf16.msra.mxu0 %v478
    %1034 = vmatprep.subr.bf16.mxu0 0
    %1035 = vmatpush1.bf16.msra.mxu0 %v477
    %1036 = vmatprep.subr.bf16.mxu0 0
    %1037 = vmatpush2.bf16.msra.mxu0 0
    %1038 = vmatprep.subr.bf16.mxu0 0
    %1039 = vmatpush2.bf16.msra.mxu0 0
    %1040 = vmatprep.subr.bf16.mxu0 0
    %1041 = vmatpush2.bf16.msra.mxu0 0
    %1042 = vmatprep.subr.bf16.mxu0 0
    %1043 = vmatpush2.bf16.msra.mxu0 0
    %1044 = vmatprep.subr.bf16.mxu0 0
    %1045 = vmatpush2.bf16.msra.mxu0 %v488
    %1046 = vmatprep.subr.bf16.mxu0 0
    %1047 = vmatpush2.bf16.msra.mxu0 %v487
    %1048 = vmatprep.subr.bf16.mxu0 0
    %1049 = vmatpush2.bf16.msra.mxu0 %v486
    %1050 = vmatprep.subr.bf16.mxu0 0
    %1051 = vmatpush2.bf16.msra.mxu0 %v485
    %1052 = vmatprep.mubr.bf16.mxu0 %v313
    %1053 = vmatmul.mubr.bf16.gmra.mxu0 %v203
    %v1054 = vpop.f32.mrf.mxu0
    %v1055 = vadd.f32 0.0, %v1054
    %v1056 = vpop.f32.mrf.mxu0
    %v1057 = vpop.f32.mrf.mxu0
    %v1058 = vadd.f32 0.0, %v1057
    %v1059 = vpop.f32.mrf.mxu0
    %1060 = vmatprep.mubr.bf16.mxu0 %v316
    %1061 = vmatmul.mubr.bf16.gmra.mxu0 %v205
    %v1062 = vpop.f32.mrf.mxu0
    %v1063 = vadd.f32 0.0, %v1062
    %v1064 = vpop.f32.mrf.mxu0
    %v1065 = vpop.f32.mrf.mxu0
    %v1066 = vadd.f32 0.0, %v1065
    %v1067 = vpop.f32.mrf.mxu0
    %1068 = vmatprep.mubr.bf16.mxu0 %v319
    %1069 = vmatmul.mubr.bf16.gmra.mxu0 %v207
    %v1070 = vpop.f32.mrf.mxu0
    %v1071 = vadd.f32 0.0, %v1070
    %v1072 = vpop.f32.mrf.mxu0
    %v1073 = vpop.f32.mrf.mxu0
    %v1074 = vadd.f32 0.0, %v1073
    %v1075 = vpop.f32.mrf.mxu0
    %1076 = vmatprep.mubr.bf16.mxu0 %v322
    %1077 = vmatmul.mubr.bf16.gmra.mxu0 %v209
    %v1078 = vpop.f32.mrf.mxu0
    %v1079 = vadd.f32 0.0, %v1078
    %v1080 = vpop.f32.mrf.mxu0
    %v1081 = vpop.f32.mrf.mxu0
    %v1082 = vadd.f32 0.0, %v1081
    %v1083 = vpop.f32.mrf.mxu0
    %1084 = vmatprep.mubr.bf16.mxu0 %v325
    %1085 = vmatmul.mubr.bf16.gmra.mxu0 %v211
    %v1086 = vpop.f32.mrf.mxu0
    %v1087 = vadd.f32 0.0, %v1086
    %v1088 = vpop.f32.mrf.mxu0
    %v1089 = vpop.f32.mrf.mxu0
    %v1090 = vadd.f32 0.0, %v1089
    %v1091 = vpop.f32.mrf.mxu0
    %1092 = vmatprep.mubr.bf16.mxu0 %v328
    %1093 = vmatmul.mubr.bf16.gmra.mxu0 %v213
    %v1094 = vpop.f32.mrf.mxu0
    %v1095 = vadd.f32 0.0, %v1094
    %v1096 = vpop.f32.mrf.mxu0
    %v1097 = vpop.f32.mrf.mxu0
    %v1098 = vadd.f32 0.0, %v1097
    %v1099 = vpop.f32.mrf.mxu0
    %1100 = vmatprep.mubr.bf16.mxu0 %v331
    %1101 = vmatmul.mubr.bf16.gmra.mxu0 %v215
    %v1102 = vpop.f32.mrf.mxu0
    %v1103 = vadd.f32 0.0, %v1102
    %v1104 = vpop.f32.mrf.mxu0
    %v1105 = vpop.f32.mrf.mxu0
    %v1106 = vadd.f32 0.0, %v1105
    %v1107 = vpop.f32.mrf.mxu0
    %1108 = vmatprep.mubr.bf16.mxu0 %v334
    %1109 = vmatmul.mubr.bf16.gmra.mxu0 %v217
    %v1110 = vpop.f32.mrf.mxu0
    %v1111 = vadd.f32 0.0, %v1110
    %v1112 = vpop.f32.mrf.mxu0
    %v1113 = vpop.f32.mrf.mxu0
    %v1114 = vadd.f32 0.0, %v1113
    %v1115 = vpop.f32.mrf.mxu0
    %1116 = vmatprep.mubr.bf16.mxu0 %v337
    %1117 = vmatmul.mubr.bf16.gmra.mxu0 %v219
    %v1118 = vpop.f32.mrf.mxu0
    %v1119 = vadd.f32 0.0, %v1118
    %v1120 = vpop.f32.mrf.mxu0
    %v1121 = vpop.f32.mrf.mxu0
    %v1122 = vadd.f32 0.0, %v1121
    %v1123 = vpop.f32.mrf.mxu0
    %1124 = vmatprep.mubr.bf16.mxu0 %v340
    %1125 = vmatmul.mubr.bf16.gmra.mxu0 %v221
    %v1126 = vpop.f32.mrf.mxu0
    %v1127 = vadd.f32 0.0, %v1126
    %v1128 = vpop.f32.mrf.mxu0
    %v1129 = vpop.f32.mrf.mxu0
    %v1130 = vadd.f32 0.0, %v1129
    %v1131 = vpop.f32.mrf.mxu0
    %1132 = vmatprep.mubr.bf16.mxu0 %v343
    %1133 = vmatmul.mubr.bf16.gmra.mxu0 %v223
    %v1134 = vpop.f32.mrf.mxu0
    %v1135 = vadd.f32 0.0, %v1134
    %v1136 = vpop.f32.mrf.mxu0
    %v1137 = vpop.f32.mrf.mxu0
    %v1138 = vadd.f32 0.0, %v1137
    %v1139 = vpop.f32.mrf.mxu0
    %1140 = vmatprep.mubr.bf16.mxu0 %v346
    %1141 = vmatmul.mubr.bf16.gmra.mxu0 %v225
    %v1142 = vpop.f32.mrf.mxu0
    %v1143 = vadd.f32 0.0, %v1142
    %v1144 = vpop.f32.mrf.mxu0
    %v1145 = vpop.f32.mrf.mxu0
    %v1146 = vadd.f32 0.0, %v1145
    %v1147 = vpop.f32.mrf.mxu0
    %1148 = vdwg.mxu0
    %v1149 = vsub.f32 %v1055, %v996
    %v1150 = vsub.f32 %v1058, %v997
    %v1151 = vsub.f32 %v1063, %v998
    %v1152 = vsub.f32 %v1066, %v999
    %v1153 = vsub.f32 %v1071, %v1000
    %v1154 = vsub.f32 %v1074, %v1001
    %v1155 = vsub.f32 %v1079, %v1002
    %v1156 = vsub.f32 %v1082, %v1003
    %v1157 = vsub.f32 %v1087, %v1004
    %v1158 = vsub.f32 %v1090, %v1005
    %v1159 = vsub.f32 %v1095, %v1006
    %v1160 = vsub.f32 %v1098, %v1007
    %v1161 = vsub.f32 %v1103, %v1008
    %v1162 = vsub.f32 %v1106, %v1009
    %v1163 = vsub.f32 %v1111, %v1010
    %v1164 = vsub.f32 %v1114, %v1011
    %v1165 = vsub.f32 %v1119, %v1012
    %v1166 = vsub.f32 %v1122, %v1013
    %v1167 = vsub.f32 %v1127, %v1014
    %v1168 = vsub.f32 %v1130, %v1015
    %v1169 = vsub.f32 %v1135, %v1016
    %v1170 = vsub.f32 %v1138, %v1017
    %v1171 = vsub.f32 %v1143, %v1018
    %v1172 = vsub.f32 %v1146, %v1019
    %v1173 = vpack.c.bf16 %v1150, %v1149
    %v1174 = vpack.c.bf16 %v1152, %v1151
    %v1175 = vpack.c.bf16 %v1154, %v1153
    %v1176 = vpack.c.bf16 %v1156, %v1155
    %v1177 = vpack.c.bf16 %v1158, %v1157
    %v1178 = vpack.c.bf16 %v1160, %v1159
    %v1179 = vpack.c.bf16 %v1162, %v1161
    %v1180 = vpack.c.bf16 %v1164, %v1163
    %v1181 = vpack.c.bf16 %v1166, %v1165
    %v1182 = vpack.c.bf16 %v1168, %v1167
    %v1183 = vpack.c.bf16 %v1170, %v1169
    %v1184 = vpack.c.bf16 %v1172, %v1171
    %s1185 = scalar_lea.vmem [#allocation6], 256
    %v1186 = vld [vmem:[%s1185] sm:$0xff]
    %v1187 = vld [vmem:[%s1185 + $0x8] sm:$0xff]
    %v1188 = vld [vmem:[%s1185 + $0x10] sm:$0xff]
    %v1189 = vld [vmem:[%s1185 + $0x18] sm:$0xff]
    %v1190 = vld [vmem:[%s1185 + $0x20] sm:$0xff]
    %v1191 = vld [vmem:[%s1185 + $0x28] sm:$0xff]
    %v1192 = vld [vmem:[%s1185 + $0x30] sm:$0xff]
    %v1193 = vld [vmem:[%s1185 + $0x38] sm:$0xff]
    %v1194 = vld [vmem:[%s1185 + $0x40] sm:$0xff]
    %v1195 = vld [vmem:[%s1185 + $0x48] sm:$0xff]
    %v1196 = vld [vmem:[%s1185 + $0x50] sm:$0xff]
    %v1197 = vld [vmem:[%s1185 + $0x58] sm:$0xff]
    %v1198 = vld [vmem:[%s1185 + $0x60] sm:$0xff]
    %v1199 = vld [vmem:[%s1185 + $0x68] sm:$0xff]
    %v1200 = vld [vmem:[%s1185 + $0x70] sm:$0xff]
    %v1201 = vld [vmem:[%s1185 + $0x78] sm:$0xff]
    %v1218 = vunpack.c.l.b16 %v1186
    %v1219 = vunpack.c.h.b16 %v1186
    %v1220 = vunpack.c.l.b16 %v1187
    %v1221 = vunpack.c.h.b16 %v1187
    %v1222 = vunpack.c.l.b16 %v1188
    %v1223 = vunpack.c.h.b16 %v1188
    %v1224 = vunpack.c.l.b16 %v1189
    %v1225 = vunpack.c.h.b16 %v1189
    %v1226 = vunpack.c.l.b16 %v1190
    %v1227 = vunpack.c.h.b16 %v1190
    %v1228 = vunpack.c.l.b16 %v1191
    %v1229 = vunpack.c.h.b16 %v1191
    %v1230 = vunpack.c.l.b16 %v1192
    %v1231 = vunpack.c.h.b16 %v1192
    %v1232 = vunpack.c.l.b16 %v1193
    %v1233 = vunpack.c.h.b16 %v1193
    %v1234 = vunpack.c.l.b16 %v1194
    %v1235 = vunpack.c.h.b16 %v1194
    %v1236 = vunpack.c.l.b16 %v1195
    %v1237 = vunpack.c.h.b16 %v1195
    %v1238 = vunpack.c.l.b16 %v1196
    %v1239 = vunpack.c.h.b16 %v1196
    %v1240 = vunpack.c.l.b16 %v1197
    %v1241 = vunpack.c.h.b16 %v1197
    %v1242 = vunpack.c.l.b16 %v1198
    %v1243 = vunpack.c.h.b16 %v1198
    %v1244 = vunpack.c.l.b16 %v1199
    %v1245 = vunpack.c.h.b16 %v1199
    %v1246 = vunpack.c.l.b16 %v1200
    %v1247 = vunpack.c.h.b16 %v1200
    %v1248 = vunpack.c.l.b16 %v1201
    %v1249 = vunpack.c.h.b16 %v1201
    %v1250 = vpack.c.b16 %v1220, %v1218
    %v1251 = vpack.c.b16 %v1221, %v1219
    %v1252 = vpack.c.b16 %v1224, %v1222
    %v1253 = vpack.c.b16 %v1225, %v1223
    %v1254 = vpack.c.b16 %v1228, %v1226
    %v1255 = vpack.c.b16 %v1229, %v1227
    %v1256 = vpack.c.b16 %v1232, %v1230
    %v1257 = vpack.c.b16 %v1233, %v1231
    %v1258 = vpack.c.b16 %v1236, %v1234
    %v1259 = vpack.c.b16 %v1237, %v1235
    %v1260 = vpack.c.b16 %v1240, %v1238
    %v1261 = vpack.c.b16 %v1241, %v1239
    %v1262 = vpack.c.b16 %v1244, %v1242
    %v1263 = vpack.c.b16 %v1245, %v1243
    %v1264 = vpack.c.b16 %v1248, %v1246
    %v1265 = vpack.c.b16 %v1249, %v1247
    %1282 = vmatprep.subr.bf16.mxu0 %v1265
    %1283 = vmatpush1.bf16.msra.mxu0 %v1264
    %1284 = vmatprep.subr.bf16.mxu0 %v1263
    %1285 = vmatpush1.bf16.msra.mxu0 %v1262
    %1286 = vmatprep.subr.bf16.mxu0 %v1261
    %1287 = vmatpush1.bf16.msra.mxu0 %v1260
    %1288 = vmatprep.subr.bf16.mxu0 %v1259
    %1289 = vmatpush1.bf16.msra.mxu0 %v1258
    %1290 = vmatprep.subr.bf16.mxu0 %v1257
    %1291 = vmatpush1.bf16.msra.mxu0 %v1256
    %1292 = vmatprep.subr.bf16.mxu0 %v1255
    %1293 = vmatpush1.bf16.msra.mxu0 %v1254
    %1294 = vmatprep.subr.bf16.mxu0 %v1253
    %1295 = vmatpush1.bf16.msra.mxu0 %v1252
    %1296 = vmatprep.subr.bf16.mxu0 %v1251
    %1297 = vmatpush1.bf16.msra.mxu0 %v1250
    %1298 = vmatprep.subr.bf16.mxu0 0
    %1299 = vmatpush2.bf16.msra.mxu0 0
    %1300 = vmatprep.subr.bf16.mxu0 0
    %1301 = vmatpush2.bf16.msra.mxu0 0
    %1302 = vmatprep.subr.bf16.mxu0 0
    %1303 = vmatpush2.bf16.msra.mxu0 0
    %1304 = vmatprep.subr.bf16.mxu0 0
    %1305 = vmatpush2.bf16.msra.mxu0 0
    %1306 = vmatprep.subr.bf16.mxu0 0
    %1307 = vmatpush2.bf16.msra.mxu0 0
    %1308 = vmatprep.subr.bf16.mxu0 0
    %1309 = vmatpush2.bf16.msra.mxu0 0
    %1310 = vmatprep.subr.bf16.mxu0 0
    %1311 = vmatpush2.bf16.msra.mxu0 0
    %1312 = vmatprep.subr.bf16.mxu0 0
    %1313 = vmatpush2.bf16.msra.mxu0 0
    %1314 = vmatprep.mubr.bf16.mxu0 0
    %1315 = vmatmul.mubr.bf16.gmra.mxu0 %v1173
    %v1316 = vpop.f32.mrf.mxu0
    %v1317 = vadd.f32 0.0, %v1316
    %v1318 = vpop.f32.mrf.mxu0
    %v1319 = vadd.f32 0.0, %v1318
    %v1320 = vpop.f32.mrf.mxu0
    %v1321 = vadd.f32 0.0, %v1320
    %v1322 = vpop.f32.mrf.mxu0
    %v1323 = vadd.f32 0.0, %v1322
    %1324 = vmatprep.mubr.bf16.mxu0 0
    %1325 = vmatmul.mubr.bf16.gmra.mxu0 %v1174
    %v1326 = vpop.f32.mrf.mxu0
    %v1327 = vadd.f32 0.0, %v1326
    %v1328 = vpop.f32.mrf.mxu0
    %v1329 = vadd.f32 0.0, %v1328
    %v1330 = vpop.f32.mrf.mxu0
    %v1331 = vadd.f32 0.0, %v1330
    %v1332 = vpop.f32.mrf.mxu0
    %v1333 = vadd.f32 0.0, %v1332
    %1334 = vmatprep.mubr.bf16.mxu0 0
    %1335 = vmatmul.mubr.bf16.gmra.mxu0 %v1175
    %v1336 = vpop.f32.mrf.mxu0
    %v1337 = vadd.f32 0.0, %v1336
    %v1338 = vpop.f32.mrf.mxu0
    %v1339 = vadd.f32 0.0, %v1338
    %v1340 = vpop.f32.mrf.mxu0
    %v1341 = vadd.f32 0.0, %v1340
    %v1342 = vpop.f32.mrf.mxu0
    %v1343 = vadd.f32 0.0, %v1342
    %1344 = vmatprep.mubr.bf16.mxu0 0
    %1345 = vmatmul.mubr.bf16.gmra.mxu0 %v1176
    %v1346 = vpop.f32.mrf.mxu0
    %v1347 = vadd.f32 0.0, %v1346
    %v1348 = vpop.f32.mrf.mxu0
    %v1349 = vadd.f32 0.0, %v1348
    %v1350 = vpop.f32.mrf.mxu0
    %v1351 = vadd.f32 0.0, %v1350
    %v1352 = vpop.f32.mrf.mxu0
    %v1353 = vadd.f32 0.0, %v1352
    %1354 = vmatprep.mubr.bf16.mxu0 0
    %1355 = vmatmul.mubr.bf16.gmra.mxu0 %v1177
    %v1356 = vpop.f32.mrf.mxu0
    %v1357 = vadd.f32 0.0, %v1356
    %v1358 = vpop.f32.mrf.mxu0
    %v1359 = vadd.f32 0.0, %v1358
    %v1360 = vpop.f32.mrf.mxu0
    %v1361 = vadd.f32 0.0, %v1360
    %v1362 = vpop.f32.mrf.mxu0
    %v1363 = vadd.f32 0.0, %v1362
    %1364 = vmatprep.mubr.bf16.mxu0 0
    %1365 = vmatmul.mubr.bf16.gmra.mxu0 %v1178
    %v1366 = vpop.f32.mrf.mxu0
    %v1367 = vadd.f32 0.0, %v1366
    %v1368 = vpop.f32.mrf.mxu0
    %v1369 = vadd.f32 0.0, %v1368
    %v1370 = vpop.f32.mrf.mxu0
    %v1371 = vadd.f32 0.0, %v1370
    %v1372 = vpop.f32.mrf.mxu0
    %v1373 = vadd.f32 0.0, %v1372
    %1374 = vmatprep.mubr.bf16.mxu0 0
    %1375 = vmatmul.mubr.bf16.gmra.mxu0 %v1179
    %v1376 = vpop.f32.mrf.mxu0
    %v1377 = vadd.f32 0.0, %v1376
    %v1378 = vpop.f32.mrf.mxu0
    %v1379 = vadd.f32 0.0, %v1378
    %v1380 = vpop.f32.mrf.mxu0
    %v1381 = vadd.f32 0.0, %v1380
    %v1382 = vpop.f32.mrf.mxu0
    %v1383 = vadd.f32 0.0, %v1382
    %1384 = vmatprep.mubr.bf16.mxu0 0
    %1385 = vmatmul.mubr.bf16.gmra.mxu0 %v1180
    %v1386 = vpop.f32.mrf.mxu0
    %v1387 = vadd.f32 0.0, %v1386
    %v1388 = vpop.f32.mrf.mxu0
    %v1389 = vadd.f32 0.0, %v1388
    %v1390 = vpop.f32.mrf.mxu0
    %v1391 = vadd.f32 0.0, %v1390
    %v1392 = vpop.f32.mrf.mxu0
    %v1393 = vadd.f32 0.0, %v1392
    %1394 = vmatprep.mubr.bf16.mxu0 0
    %1395 = vmatmul.mubr.bf16.gmra.mxu0 %v1181
    %v1396 = vpop.f32.mrf.mxu0
    %v1397 = vadd.f32 0.0, %v1396
    %v1398 = vpop.f32.mrf.mxu0
    %v1399 = vadd.f32 0.0, %v1398
    %v1400 = vpop.f32.mrf.mxu0
    %v1401 = vadd.f32 0.0, %v1400
    %v1402 = vpop.f32.mrf.mxu0
    %v1403 = vadd.f32 0.0, %v1402
    %1404 = vmatprep.mubr.bf16.mxu0 0
    %1405 = vmatmul.mubr.bf16.gmra.mxu0 %v1182
    %v1406 = vpop.f32.mrf.mxu0
    %v1407 = vadd.f32 0.0, %v1406
    %v1408 = vpop.f32.mrf.mxu0
    %v1409 = vadd.f32 0.0, %v1408
    %v1410 = vpop.f32.mrf.mxu0
    %v1411 = vadd.f32 0.0, %v1410
    %v1412 = vpop.f32.mrf.mxu0
    %v1413 = vadd.f32 0.0, %v1412
    %1414 = vmatprep.mubr.bf16.mxu0 0
    %1415 = vmatmul.mubr.bf16.gmra.mxu0 %v1183
    %v1416 = vpop.f32.mrf.mxu0
    %v1417 = vadd.f32 0.0, %v1416
    %v1418 = vpop.f32.mrf.mxu0
    %v1419 = vadd.f32 0.0, %v1418
    %v1420 = vpop.f32.mrf.mxu0
    %v1421 = vadd.f32 0.0, %v1420
    %v1422 = vpop.f32.mrf.mxu0
    %v1423 = vadd.f32 0.0, %v1422
    %1424 = vmatprep.mubr.bf16.mxu0 0
    %1425 = vmatmul.mubr.bf16.gmra.mxu0 %v1184
    %v1426 = vpop.f32.mrf.mxu0
    %v1427 = vadd.f32 0.0, %v1426
    %v1428 = vpop.f32.mrf.mxu0
    %v1429 = vadd.f32 0.0, %v1428
    %v1430 = vpop.f32.mrf.mxu0
    %v1431 = vadd.f32 0.0, %v1430
    %v1432 = vpop.f32.mrf.mxu0
    %v1433 = vadd.f32 0.0, %v1432
    %1434 = vdwg.mxu0
    %v1435 = vadd.f32 %v854, %v1317
    %v1436 = vadd.f32 %v856, %v1319
    %v1437 = vadd.f32 %v858, %v1321
    %v1438 = vadd.f32 %v860, %v1323
    %v1439 = vadd.f32 %v864, %v1327
    %v1440 = vadd.f32 %v866, %v1329
    %v1441 = vadd.f32 %v868, %v1331
    %v1442 = vadd.f32 %v870, %v1333
    %v1443 = vadd.f32 %v874, %v1337
    %v1444 = vadd.f32 %v876, %v1339
    %v1445 = vadd.f32 %v878, %v1341
    %v1446 = vadd.f32 %v880, %v1343
    %v1447 = vadd.f32 %v884, %v1347
    %v1448 = vadd.f32 %v886, %v1349
    %v1449 = vadd.f32 %v888, %v1351
    %v1450 = vadd.f32 %v890, %v1353
    %v1451 = vadd.f32 %v894, %v1357
    %v1452 = vadd.f32 %v896, %v1359
    %v1453 = vadd.f32 %v898, %v1361
    %v1454 = vadd.f32 %v900, %v1363
    %v1455 = vadd.f32 %v904, %v1367
    %v1456 = vadd.f32 %v906, %v1369
    %v1457 = vadd.f32 %v908, %v1371
    %v1458 = vadd.f32 %v910, %v1373
    %v1459 = vadd.f32 %v914, %v1377
    %v1460 = vadd.f32 %v916, %v1379
    %v1461 = vadd.f32 %v918, %v1381
    %v1462 = vadd.f32 %v920, %v1383
    %v1463 = vadd.f32 %v924, %v1387
    %v1464 = vadd.f32 %v926, %v1389
    %v1465 = vadd.f32 %v928, %v1391
    %v1466 = vadd.f32 %v930, %v1393
    %v1467 = vadd.f32 %v934, %v1397
    %v1468 = vadd.f32 %v936, %v1399
    %v1469 = vadd.f32 %v938, %v1401
    %v1470 = vadd.f32 %v940, %v1403
    %v1471 = vadd.f32 %v944, %v1407
    %v1472 = vadd.f32 %v946, %v1409
    %v1473 = vadd.f32 %v948, %v1411
    %v1474 = vadd.f32 %v950, %v1413
    %v1475 = vadd.f32 %v954, %v1417
    %v1476 = vadd.f32 %v956, %v1419
    %v1477 = vadd.f32 %v958, %v1421
    %v1478 = vadd.f32 %v960, %v1423
    %v1479 = vadd.f32 %v964, %v1427
    %v1480 = vadd.f32 %v966, %v1429
    %v1481 = vadd.f32 %v968, %v1431
    %v1482 = vadd.f32 %v970, %v1433
    %v1483 = vld [vmem:[%s3] sm:$0x3]
    %v1485 = vlaneseq
    %v1486 = vshrl.u32 %v1485, 7
    %v1487 = vsub.s32 0, %v1486
    %v1488 = vrot.slane %v1483, %v1487
    %v1489 = vlaneseq
    %v1490 = vshrl.u32 %v1489, 7
    %v1491 = vsub.s32 1, %v1490
    %v1492 = vrot.slane %v1483, %v1491
    %v1495 = vadd.f32 %v1435, %v1488
    %v1496 = vadd.f32 %v1436, %v1492
    %v1497 = vadd.f32 %v1437, %v1488
    %v1498 = vadd.f32 %v1438, %v1492
    %v1499 = vadd.f32 %v1439, %v1488
    %v1500 = vadd.f32 %v1440, %v1492
    %v1501 = vadd.f32 %v1441, %v1488
    %v1502 = vadd.f32 %v1442, %v1492
    %v1503 = vadd.f32 %v1443, %v1488
    %v1504 = vadd.f32 %v1444, %v1492
    %v1505 = vadd.f32 %v1445, %v1488
    %v1506 = vadd.f32 %v1446, %v1492
    %v1507 = vadd.f32 %v1447, %v1488
    %v1508 = vadd.f32 %v1448, %v1492
    %v1509 = vadd.f32 %v1449, %v1488
    %v1510 = vadd.f32 %v1450, %v1492
    %v1511 = vadd.f32 %v1451, %v1488
    %v1512 = vadd.f32 %v1452, %v1492
    %v1513 = vadd.f32 %v1453, %v1488
    %v1514 = vadd.f32 %v1454, %v1492
    %v1515 = vadd.f32 %v1455, %v1488
    %v1516 = vadd.f32 %v1456, %v1492
    %v1517 = vadd.f32 %v1457, %v1488
    %v1518 = vadd.f32 %v1458, %v1492
    %v1519 = vadd.f32 %v1459, %v1488
    %v1520 = vadd.f32 %v1460, %v1492
    %v1521 = vadd.f32 %v1461, %v1488
    %v1522 = vadd.f32 %v1462, %v1492
    %v1523 = vadd.f32 %v1463, %v1488
    %v1524 = vadd.f32 %v1464, %v1492
    %v1525 = vadd.f32 %v1465, %v1488
    %v1526 = vadd.f32 %v1466, %v1492
    %v1527 = vadd.f32 %v1467, %v1488
    %v1528 = vadd.f32 %v1468, %v1492
    %v1529 = vadd.f32 %v1469, %v1488
    %v1530 = vadd.f32 %v1470, %v1492
    %v1531 = vadd.f32 %v1471, %v1488
    %v1532 = vadd.f32 %v1472, %v1492
    %v1533 = vadd.f32 %v1473, %v1488
    %v1534 = vadd.f32 %v1474, %v1492
    %v1535 = vadd.f32 %v1475, %v1488
    %v1536 = vadd.f32 %v1476, %v1492
    %v1537 = vadd.f32 %v1477, %v1488
    %v1538 = vadd.f32 %v1478, %v1492
    %v1539 = vadd.f32 %v1479, %v1488
    %v1540 = vadd.f32 %v1480, %v1492
    %v1541 = vadd.f32 %v1481, %v1488
    %v1542 = vadd.f32 %v1482, %v1492
    %1543 = vst [vmem:[#allocation8] sm:$0xff] %v1495
    %1544 = vst [vmem:[#allocation8 + $0x8] sm:$0xff] %v1496
    %1545 = vst [vmem:[#allocation8 + $0x10] sm:$0xff] %v1497
    %1546 = vst [vmem:[#allocation8 + $0x18] sm:$0xff] %v1498
    %1547 = vst [vmem:[#allocation8 + $0x20] sm:$0xff] %v1499
    %1548 = vst [vmem:[#allocation8 + $0x28] sm:$0xff] %v1500
    %1549 = vst [vmem:[#allocation8 + $0x30] sm:$0xff] %v1501
    %1550 = vst [vmem:[#allocation8 + $0x38] sm:$0xff] %v1502
    %1551 = vst [vmem:[#allocation8 + $0x40] sm:$0xff] %v1503
    %1552 = vst [vmem:[#allocation8 + $0x48] sm:$0xff] %v1504
    %1553 = vst [vmem:[#allocation8 + $0x50] sm:$0xff] %v1505
    %1554 = vst [vmem:[#allocation8 + $0x58] sm:$0xff] %v1506
    %1555 = vst [vmem:[#allocation8 + $0x60] sm:$0xff] %v1507
    %1556 = vst [vmem:[#allocation8 + $0x68] sm:$0xff] %v1508
    %1557 = vst [vmem:[#allocation8 + $0x70] sm:$0xff] %v1509
    %1558 = vst [vmem:[#allocation8 + $0x78] sm:$0xff] %v1510
    %1559 = vst [vmem:[#allocation8 + $0x80] sm:$0xff] %v1511
    %1560 = vst [vmem:[#allocation8 + $0x88] sm:$0xff] %v1512
    %1561 = vst [vmem:[#allocation8 + $0x90] sm:$0xff] %v1513
    %1562 = vst [vmem:[#allocation8 + $0x98] sm:$0xff] %v1514
    %1563 = vst [vmem:[#allocation8 + $0xa0] sm:$0xff] %v1515
    %1564 = vst [vmem:[#allocation8 + $0xa8] sm:$0xff] %v1516
    %1565 = vst [vmem:[#allocation8 + $0xb0] sm:$0xff] %v1517
    %1566 = vst [vmem:[#allocation8 + $0xb8] sm:$0xff] %v1518
    %1567 = vst [vmem:[#allocation8 + $0xc0] sm:$0xff] %v1519
    %1568 = vst [vmem:[#allocation8 + $0xc8] sm:$0xff] %v1520
    %1569 = vst [vmem:[#allocation8 + $0xd0] sm:$0xff] %v1521
    %1570 = vst [vmem:[#allocation8 + $0xd8] sm:$0xff] %v1522
    %1571 = vst [vmem:[#allocation8 + $0xe0] sm:$0xff] %v1523
    %1572 = vst [vmem:[#allocation8 + $0xe8] sm:$0xff] %v1524
    %1573 = vst [vmem:[#allocation8 + $0xf0] sm:$0xff] %v1525
    %1574 = vst [vmem:[#allocation8 + $0xf8] sm:$0xff] %v1526
    %1575 = vst [vmem:[#allocation8 + $0x100] sm:$0xff] %v1527
    %1576 = vst [vmem:[#allocation8 + $0x108] sm:$0xff] %v1528
    %1577 = vst [vmem:[#allocation8 + $0x110] sm:$0xff] %v1529
    %1578 = vst [vmem:[#allocation8 + $0x118] sm:$0xff] %v1530
    %1579 = vst [vmem:[#allocation8 + $0x120] sm:$0xff] %v1531
    %1580 = vst [vmem:[#allocation8 + $0x128] sm:$0xff] %v1532
    %1581 = vst [vmem:[#allocation8 + $0x130] sm:$0xff] %v1533
    %1582 = vst [vmem:[#allocation8 + $0x138] sm:$0xff] %v1534
    %1583 = vst [vmem:[#allocation8 + $0x140] sm:$0xff] %v1535
    %1584 = vst [vmem:[#allocation8 + $0x148] sm:$0xff] %v1536
    %1585 = vst [vmem:[#allocation8 + $0x150] sm:$0xff] %v1537
    %1586 = vst [vmem:[#allocation8 + $0x158] sm:$0xff] %v1538
    %1587 = vst [vmem:[#allocation8 + $0x160] sm:$0xff] %v1539
    %1588 = vst [vmem:[#allocation8 + $0x168] sm:$0xff] %v1540
    %1589 = vst [vmem:[#allocation8 + $0x170] sm:$0xff] %v1541
    %1590 = vst [vmem:[#allocation8 + $0x178] sm:$0xff] %v1542
    %v1591 = vadd.f32 %v1495, %v1497
    %v1592 = vadd.f32 %v1591, %v1499
    %v1593 = vadd.f32 %v1592, %v1501
    %v1594 = vadd.f32 %v1593, %v1503
    %v1595 = vadd.f32 %v1594, %v1505
    %v1596 = vadd.f32 %v1595, %v1507
    %v1597 = vadd.f32 %v1596, %v1509
    %v1598 = vadd.f32 %v1597, %v1511
    %v1599 = vadd.f32 %v1598, %v1513
    %v1600 = vadd.f32 %v1599, %v1515
    %v1601 = vadd.f32 %v1600, %v1517
    %v1602 = vadd.f32 %v1601, %v1519
    %v1603 = vadd.f32 %v1602, %v1521
    %v1604 = vadd.f32 %v1603, %v1523
    %v1605 = vadd.f32 %v1604, %v1525
    %v1606 = vadd.f32 %v1605, %v1527
    %v1607 = vadd.f32 %v1606, %v1529
    %v1608 = vadd.f32 %v1607, %v1531
    %v1609 = vadd.f32 %v1608, %v1533
    %v1610 = vadd.f32 %v1609, %v1535
    %v1611 = vadd.f32 %v1610, %v1537
    %v1612 = vadd.f32 %v1611, %v1539
    %v1613 = vadd.f32 %v1612, %v1541
    %v1614 = vrot.slane %v1613, 4
    %v1615 = vadd.f32 %v1613, %v1614
    %v1616 = vrot.slane %v1615, 2
    %v1617 = vadd.f32 %v1615, %v1616
    %v1618 = vrot.slane %v1617, 1
    %v1619 = vadd.f32 %v1617, %v1618
    %v1620 = vadd.f32 %v1496, %v1498
    %v1621 = vadd.f32 %v1620, %v1500
    %v1622 = vadd.f32 %v1621, %v1502
    %v1623 = vadd.f32 %v1622, %v1504
    %v1624 = vadd.f32 %v1623, %v1506
    %v1625 = vadd.f32 %v1624, %v1508
    %v1626 = vadd.f32 %v1625, %v1510
    %v1627 = vadd.f32 %v1626, %v1512
    %v1628 = vadd.f32 %v1627, %v1514
    %v1629 = vadd.f32 %v1628, %v1516
    %v1630 = vadd.f32 %v1629, %v1518
    %v1631 = vadd.f32 %v1630, %v1520
    %v1632 = vadd.f32 %v1631, %v1522
    %v1633 = vadd.f32 %v1632, %v1524
    %v1634 = vadd.f32 %v1633, %v1526
    %v1635 = vadd.f32 %v1634, %v1528
    %v1636 = vadd.f32 %v1635, %v1530
    %v1637 = vadd.f32 %v1636, %v1532
    %v1638 = vadd.f32 %v1637, %v1534
    %v1639 = vadd.f32 %v1638, %v1536
    %v1640 = vadd.f32 %v1639, %v1538
    %v1641 = vadd.f32 %v1640, %v1540
    %v1642 = vadd.f32 %v1641, %v1542
    %v1643 = vrot.slane %v1642, 4
    %v1644 = vadd.f32 %v1642, %v1643
    %v1645 = vrot.slane %v1644, 2
    %v1646 = vadd.f32 %v1644, %v1645
    %v1647 = vrot.slane %v1646, 1
    %v1648 = vadd.f32 %v1646, %v1647
    %v1651 = vcombine.low %v1619, %v1648
    %v1653 = vunpack.c.l.s4 1966171168
    %v1654 = vunpack.c.0.s8 %v1653
    %v1655 = vlaneseq
    %v1656 = vshrl.u32 %v1655, 7
    %v1657 = vsub.s32 %v1654, %v1656
    %v1658 = vrot.slane %v1651, %v1657
    %v1660 = vunpack.c.l.s4 1966171168
    %v1661 = vunpack.c.0.s8 %v1660
    %v1662 = vlaneseq
    %v1663 = vshrl.u32 %v1662, 7
    %v1664 = vsub.s32 %v1661, %v1663
    %v1665 = vrot.slane %v1658, %v1664
    %v1667 = vlaneseq
    %vm1668 = vcmp.ge.s32.totalorder %v1667, 0
    %vm1669 = vcmp.lt.s32.totalorder %v1667, 256
    %vm1670 = vmand %vm1668, %vm1669
    %1671 = vst.msk [vmem:[#allocation9] ss:$2 sm:$0x3] %vm1670, %v1665
    %v1672 = vmul.f32 %v1495, %v1495
    %v1673 = vmul.f32 %v1496, %v1496
    %v1674 = vmul.f32 %v1497, %v1497
    %v1675 = vmul.f32 %v1498, %v1498
    %v1676 = vmul.f32 %v1499, %v1499
    %v1677 = vmul.f32 %v1500, %v1500
    %v1678 = vmul.f32 %v1501, %v1501
    %v1679 = vmul.f32 %v1502, %v1502
    %v1680 = vmul.f32 %v1503, %v1503
    %v1681 = vmul.f32 %v1504, %v1504
    %v1682 = vmul.f32 %v1505, %v1505
    %v1683 = vmul.f32 %v1506, %v1506
    %v1684 = vmul.f32 %v1507, %v1507
    %v1685 = vmul.f32 %v1508, %v1508
    %v1686 = vmul.f32 %v1509, %v1509
    %v1687 = vmul.f32 %v1510, %v1510
    %v1688 = vmul.f32 %v1511, %v1511
    %v1689 = vmul.f32 %v1512, %v1512
    %v1690 = vmul.f32 %v1513, %v1513
    %v1691 = vmul.f32 %v1514, %v1514
    %v1692 = vmul.f32 %v1515, %v1515
    %v1693 = vmul.f32 %v1516, %v1516
    %v1694 = vmul.f32 %v1517, %v1517
    %v1695 = vmul.f32 %v1518, %v1518
    %v1696 = vmul.f32 %v1519, %v1519
    %v1697 = vmul.f32 %v1520, %v1520
    %v1698 = vmul.f32 %v1521, %v1521
    %v1699 = vmul.f32 %v1522, %v1522
    %v1700 = vmul.f32 %v1523, %v1523
    %v1701 = vmul.f32 %v1524, %v1524
    %v1702 = vmul.f32 %v1525, %v1525
    %v1703 = vmul.f32 %v1526, %v1526
    %v1704 = vmul.f32 %v1527, %v1527
    %v1705 = vmul.f32 %v1528, %v1528
    %v1706 = vmul.f32 %v1529, %v1529
    %v1707 = vmul.f32 %v1530, %v1530
    %v1708 = vmul.f32 %v1531, %v1531
    %v1709 = vmul.f32 %v1532, %v1532
    %v1710 = vmul.f32 %v1533, %v1533
    %v1711 = vmul.f32 %v1534, %v1534
    %v1712 = vmul.f32 %v1535, %v1535
    %v1713 = vmul.f32 %v1536, %v1536
    %v1714 = vmul.f32 %v1537, %v1537
    %v1715 = vmul.f32 %v1538, %v1538
    %v1716 = vmul.f32 %v1539, %v1539
    %v1717 = vmul.f32 %v1540, %v1540
    %v1718 = vmul.f32 %v1541, %v1541
    %v1719 = vmul.f32 %v1542, %v1542
    %v1720 = vadd.f32 %v1672, %v1674
    %v1721 = vadd.f32 %v1720, %v1676
    %v1722 = vadd.f32 %v1721, %v1678
    %v1723 = vadd.f32 %v1722, %v1680
    %v1724 = vadd.f32 %v1723, %v1682
    %v1725 = vadd.f32 %v1724, %v1684
    %v1726 = vadd.f32 %v1725, %v1686
    %v1727 = vadd.f32 %v1726, %v1688
    %v1728 = vadd.f32 %v1727, %v1690
    %v1729 = vadd.f32 %v1728, %v1692
    %v1730 = vadd.f32 %v1729, %v1694
    %v1731 = vadd.f32 %v1730, %v1696
    %v1732 = vadd.f32 %v1731, %v1698
    %v1733 = vadd.f32 %v1732, %v1700
    %v1734 = vadd.f32 %v1733, %v1702
    %v1735 = vadd.f32 %v1734, %v1704
    %v1736 = vadd.f32 %v1735, %v1706
    %v1737 = vadd.f32 %v1736, %v1708
    %v1738 = vadd.f32 %v1737, %v1710
    %v1739 = vadd.f32 %v1738, %v1712
    %v1740 = vadd.f32 %v1739, %v1714
    %v1741 = vadd.f32 %v1740, %v1716
    %v1742 = vadd.f32 %v1741, %v1718
    %v1743 = vrot.slane %v1742, 4
    %v1744 = vadd.f32 %v1742, %v1743
    %v1745 = vrot.slane %v1744, 2
    %v1746 = vadd.f32 %v1744, %v1745
    %v1747 = vrot.slane %v1746, 1
    %v1748 = vadd.f32 %v1746, %v1747
    %v1749 = vadd.f32 %v1673, %v1675
    %v1750 = vadd.f32 %v1749, %v1677
    %v1751 = vadd.f32 %v1750, %v1679
    %v1752 = vadd.f32 %v1751, %v1681
    %v1753 = vadd.f32 %v1752, %v1683
    %v1754 = vadd.f32 %v1753, %v1685
    %v1755 = vadd.f32 %v1754, %v1687
    %v1756 = vadd.f32 %v1755, %v1689
    %v1757 = vadd.f32 %v1756, %v1691
    %v1758 = vadd.f32 %v1757, %v1693
    %v1759 = vadd.f32 %v1758, %v1695
    %v1760 = vadd.f32 %v1759, %v1697
    %v1761 = vadd.f32 %v1760, %v1699
    %v1762 = vadd.f32 %v1761, %v1701
    %v1763 = vadd.f32 %v1762, %v1703
    %v1764 = vadd.f32 %v1763, %v1705
    %v1765 = vadd.f32 %v1764, %v1707
    %v1766 = vadd.f32 %v1765, %v1709
    %v1767 = vadd.f32 %v1766, %v1711
    %v1768 = vadd.f32 %v1767, %v1713
    %v1769 = vadd.f32 %v1768, %v1715
    %v1770 = vadd.f32 %v1769, %v1717
    %v1771 = vadd.f32 %v1770, %v1719
    %v1772 = vrot.slane %v1771, 4
    %v1773 = vadd.f32 %v1771, %v1772
    %v1774 = vrot.slane %v1773, 2
    %v1775 = vadd.f32 %v1773, %v1774
    %v1776 = vrot.slane %v1775, 1
    %v1777 = vadd.f32 %v1775, %v1776
    %v1780 = vcombine.low %v1748, %v1777
    %v1782 = vunpack.c.l.s4 1966171168
    %v1783 = vunpack.c.0.s8 %v1782
    %v1784 = vlaneseq
    %v1785 = vshrl.u32 %v1784, 7
    %v1786 = vsub.s32 %v1783, %v1785
    %v1787 = vrot.slane %v1780, %v1786
    %v1789 = vunpack.c.l.s4 1966171168
    %v1790 = vunpack.c.0.s8 %v1789
    %v1791 = vlaneseq
    %v1792 = vshrl.u32 %v1791, 7
    %v1793 = vsub.s32 %v1790, %v1792
    %v1794 = vrot.slane %v1787, %v1793
    %s1796 = scalar_lea.vmem [#allocation9], 1
    %1797 = vst.msk [vmem:[%s1796] ss:$2 sm:$0x3] %vm1670, %v1794
    // Predicated region
    $region31: #{tpu_custom_call.1} parent=1 // pred_check
      _
    $region32: #{tpu_custom_call.1} parent=1 // pred_check_branch
      %1799 = sbr.rel (0) target = $region34
    $region33: #{tpu_custom_call.1} parent=1 // pred_region
      %s1801 = ssub.s32 6144, 6144
      %1802 = vsyncadd [#allocation5], %s1801
      %s1803 = sshll.u32 [#allocation8], 4
      %s1804 = int_to_ptr.vmem [resolvable:$true] %s1803
      %1809 = dma.vmem_to_hbm [thread:$0]  %s1804, 6144, %s4, [#allocation5], 256, 256, 16
    $region34: #{tpu_custom_call.1} parent=1 // pred_fallthru
      _
    // Predicated region
    $region35: #{tpu_custom_call.1} parent=1 // pred_check
      _
    $region36: #{tpu_custom_call.1} parent=1 // pred_check_branch
      %1811 = sbr.rel (0) target = $region38
    $region37: #{tpu_custom_call.1} parent=1 // pred_region
      %s1813 = ssub.s32 64, 64
      %1814 = vsyncadd [#allocation10], %s1813
      %s1816 = sshll.u32 [#allocation9], 4
      %s1817 = int_to_ptr.vmem [resolvable:$true] %s1816
      %1819 = dma.vmem_to_hbm [thread:$0]  %s1817, 64, %s5, [#allocation10]
    $region38: #{tpu_custom_call.1} parent=1 // pred_fallthru
      _
    // Predicated region
    $region39: #{tpu_custom_call.1} parent=1 // pred_check
      _
    $region40: #{tpu_custom_call.1} parent=1 // pred_check_branch
      %1821 = sbr.rel (0) target = $region42
    $region41: #{tpu_custom_call.1} parent=1 // pred_region
      %1822 = dma.done [#allocation5], 6144
    $region42: #{tpu_custom_call.1} parent=1 // pred_fallthru
      _
    // Predicated region
    $region43: #{tpu_custom_call.1} parent=1 // pred_check
      _
    $region44: #{tpu_custom_call.1} parent=1 // pred_check_branch
      %1824 = sbr.rel (0) target = $region46
    $region45: #{tpu_custom_call.1} parent=1 // pred_region
      %1825 = dma.done [#allocation10], 64
    $region46: #{tpu_custom_call.1} parent=1 // pred_fallthru
      _
    %1826 = vsyncpa [#allocation4], 1
    %1827 = vsyncpa [#allocation7], 1
    %1828 = vsyncpa [#allocation5], 1
    %1829 = vsyncpa [#allocation10], 1

</llo_original>
